<compile_context>
chip_gen: v6e
topology: v6e:2x2x1
jax: 0.10.0
libtpu: 0.0.40
codegen_flags: <defaults>
</compile_context>

<pallas_src>
import functools

import jax
import jax.numpy as jnp
from jax import lax
from jax.experimental import pallas as pl
from jax.experimental.pallas import tpu as pltpu

EPS = 1e-5            # nn.BatchNorm1d / nn.LayerNorm default eps
LANES = 128           # padded channel width (one full lane dimension)

# bf16 weight-slab row offsets (each weight is one [128,128] tile):
#   per block: (conv1, conv2, skip-or-None)
_W_OFFSETS = [(0 * LANES, 1 * LANES, 2 * LANES),
              (3 * LANES, 4 * LANES, None),
              (5 * LANES, 6 * LANES, None)]
_FC_W_OFF = 7 * LANES
_W_ROWS = 8 * LANES

# f32 vector-slab rows: per block b, rows 8b..8b+7 =
#   [conv1_bias, bn1_gamma, bn1_beta, conv2_bias, bn2_gamma, bn2_beta,
#    ln_gamma, ln_beta]
_SKIP_B_ROW = 24
_FC_B_ROW = 25
_V_ROWS = 32


# ---------------------- shared packed/fused forward math ---------------------
def _packed_forward(Lcat, x, get_w, get_v, hid, roll):
    """Lcat: bf16 [2N, N] = [L ; L@L];  x: f32 [N, LANES] (lanes >= c_in zero);
    get_w(off) -> bf16 [LANES, LANES];  get_v(row) -> f32 [1, LANES];
    roll(a, shift) -> lane roll toward higher lane index (np.roll convention)."""
    n, p = x.shape
    lane = lax.broadcasted_iota(jnp.int32, (1, p), 1)
    ln_mask = (lane < hid).astype(jnp.float32)
    inv_c = 1.0 / float(hid)

    def cheb(xin, w_off, bias):
        # ChebConv K=3 fully fused:
        #   one MXU pass gives t1 = L t0 and u2 = L^2 t0 (Lcat = [L ; L^2]),
        #   lane-pack [t0 | t1 | u2] at offsets {0, hid, 2*hid} (3*hid <= 128),
        #   one K=128 matmul against [w0-w2 ; w1 ; 2*w2] (folds t2 = 2 L t1 - t0).
        t0b = xin.astype(jnp.bfloat16)
        lt = jnp.dot(Lcat, t0b, preferred_element_type=jnp.float32)   # [2N, LANES] f32
        t1, u2 = lt[:n], lt[n:]
        feats = xin + roll(t1, hid) + roll(u2, 2 * hid)               # f32, lane-packed
        return jnp.dot(feats.astype(jnp.bfloat16), get_w(w_off),
                       preferred_element_type=jnp.float32) + bias

    def batch_norm(h, gamma, beta):
        # training-mode batch statistics over the node axis (per graph, f32)
        mu = jnp.mean(h, axis=0, keepdims=True)
        var = jnp.mean((h - mu) ** 2, axis=0, keepdims=True)
        return gamma * (h - mu) * lax.rsqrt(var + EPS) + beta

    def layer_norm(h, gamma, beta):
        # masked stats over the real `hid` channels (padded lanes are zero)
        mu = jnp.sum(h * ln_mask, axis=-1, keepdims=True) * inv_c
        d = (h - mu) * ln_mask
        var = jnp.sum(d * d, axis=-1, keepdims=True) * inv_c
        return gamma * (h - mu) * lax.rsqrt(var + EPS) + beta

    h = x
    for blk, (c1_off, c2_off, skip_off) in enumerate(_W_OFFSETS):
        vb = 8 * blk
        if skip_off is not None:                      # skip = nn.Linear (block 0)
            residual = jnp.dot(h.astype(jnp.bfloat16), get_w(skip_off),
                               preferred_element_type=jnp.float32) + get_v(_SKIP_B_ROW)
        else:                                         # skip = nn.Identity
            residual = h
        a = jnp.maximum(
            batch_norm(cheb(h, c1_off, get_v(vb + 0)), get_v(vb + 1), get_v(vb + 2)), 0.0)
        r = batch_norm(cheb(a, c2_off, get_v(vb + 3)), get_v(vb + 4), get_v(vb + 5)) + residual
        h = jnp.maximum(layer_norm(r, get_v(vb + 6), get_v(vb + 7)), 0.0)

    return jnp.dot(h.astype(jnp.bfloat16), get_w(_FC_W_OFF),
                   preferred_element_type=jnp.float32) + get_v(_FC_B_ROW)


# ------------------------------ Pallas kernel --------------------------------
def hgm_kernel(Lcat_ref, x_ref, w_ref, v_ref, out_ref, *, hid):
    def get_w(off):                              # static [128,128] bf16 tile
        return w_ref[pl.ds(off, LANES), :]

    def get_v(row):                              # single [1,128] f32 vector row
        return v_ref[pl.ds(row, 1), :]

    out = _packed_forward(Lcat_ref[...], x_ref[...], get_w, get_v, hid,
                          roll=lambda a, s: pltpu.roll(a, s, 1))
    out_ref[...] = out.astype(out_ref.dtype)


@functools.partial(jax.jit, static_argnames=("hid", "out_dim"))
def hierarchical_graph_module(x_pad, Lcat, w_slab, v_slab, *, hid, out_dim):
    """x_pad: f32 [B, N, 128];  Lcat: bf16 [B, 2N, N];  slabs shared by all graphs."""
    b, n, _ = x_pad.shape
    out = pl.pallas_call(
        functools.partial(hgm_kernel, hid=hid),
        out_shape=jax.ShapeDtypeStruct((b, n, LANES), jnp.float32),
        grid=(b,),
        in_specs=[
            pl.BlockSpec((None, 2 * n, n), lambda i: (i, 0, 0)),    # per-graph [L ; L^2]
            pl.BlockSpec((None, n, LANES), lambda i: (i, 0, 0)),    # per-graph features
            pl.BlockSpec((_W_ROWS, LANES), lambda i: (0, 0)),       # shared weight slab
            pl.BlockSpec((_V_ROWS, LANES), lambda i: (0, 0)),       # shared vector slab
        ],
        out_specs=pl.BlockSpec((None, n, LANES), lambda i: (i, 0, 0)),
        compiler_params=pltpu.CompilerParams(
            dimension_semantics=("parallel",)),     # shard graphs across v7x cores
    )(Lcat, x_pad, w_slab, v_slab)
    return out[..., :out_dim]                       # channel un-padding stays on host


# --------------------------------- glue --------------------------------------
def build_scaled_laplacian(edge_index, n):
    # torch_geometric ChebConv.__norm__ with lambda_max=2.0, unit edge weights:
    # L_hat = (2/lambda_max) * (I - D^-1/2 A D^-1/2) - I = -D^-1/2 A D^-1/2
    # TODO(synk): guard duplicate edges / self-loops if real edge_index has them.
    src, dst = edge_index[0], edge_index[1]
    a = jnp.zeros((n, n), jnp.float32).at[dst, src].add(1.0)
    deg = jnp.sum(a, axis=1)
    dinv = jnp.where(deg > 0, 1.0 / jnp.sqrt(deg), 0.0)
    return -(dinv[:, None] * a * dinv[None, :])


def build_lcat(edge_index, n):
    """[L ; L@L] stacked along rows, f32 [2n, n] (caller casts to bf16)."""
    L = build_scaled_laplacian(edge_index, n)
    return jnp.concatenate([L, L @ L], axis=0)


def init_params(key, in_dim, hid, out_dim):
    """Deterministic synthetic parameters (weights pre-transposed to [in, out])."""
    keys = iter(jax.random.split(key, 64))

    def lin_w(ci, co):
        return jax.random.normal(next(keys), (ci, co), jnp.float32) / jnp.sqrt(float(ci))

    def vec(c, scale=0.1, base=0.0):
        return base + scale * jax.random.normal(next(keys), (1, c), jnp.float32)

    flat = []
    dims = [(in_dim, hid), (hid, hid), (hid, hid)]
    for blk, (ci, co) in enumerate(dims):
        flat += [lin_w(ci, co), lin_w(ci, co), lin_w(ci, co), vec(co)]   # conv1 (K=3) + bias
        flat += [lin_w(co, co), lin_w(co, co), lin_w(co, co), vec(co)]   # conv2 (K=3) + bias
        flat += [vec(co, base=1.0), vec(co)]                             # bn1 gamma/beta
        flat += [vec(co, base=1.0), vec(co)]                             # bn2 gamma/beta
        flat += [vec(co, base=1.0), vec(co)]                             # ln gamma/beta
        if blk == 0 and ci != co:
            flat += [lin_w(ci, co), vec(co)]                             # skip Linear
    flat += [lin_w(hid, out_dim), vec(out_dim)]                          # fc_out
    return flat


def pack_params(flat, hid):
    """Pack the 46 module tensors into one bf16 weight slab + one f32 vector slab."""
    def pad_w(w, row_off=0):
        z = jnp.zeros((LANES, LANES), jnp.float32)
        return z.at[row_off:row_off + w.shape[0], :w.shape[1]].set(w)

    def pad_v(v):
        return jnp.zeros((1, LANES), jnp.float32).at[:, :v.shape[1]].set(v)

    def stacked(w0, w1, w2):
        # fold t2 = 2*L t1 - t0: rows {0, hid, 2*hid} hold [w0-w2 ; w1 ; 2*w2],
        # matching the lane-packed [t0 | t1 | u2] operand (K = 128, not 384).
        return pad_w(w0 - w2, 0) + pad_w(w1, hid) + pad_w(2.0 * w2, 2 * hid)

    idx = 0

    def take(k):
        nonlocal idx
        v = flat[idx:idx + k]
        idx += k
        return v

    w_rows = []
    v_rows = [jnp.zeros((1, LANES), jnp.float32) for _ in range(_V_ROWS)]
    for blk in range(3):
        (w10, w11, w12, b1, w20, w21, w22, b2,
         g1, be1, g2, be2, lg, lb) = take(14)
        w_rows += [stacked(w10, w11, w12), stacked(w20, w21, w22)]
        if blk == 0:
            sw, sb = take(2)
            w_rows.append(pad_w(sw))
            v_rows[_SKIP_B_ROW] = pad_v(sb)
        vb = 8 * blk
        for off, v in enumerate([b1, g1, be1, b2, g2, be2, lg, lb]):
            v_rows[vb + off] = pad_v(v)
    fcw, fcb = take(2)
    w_rows.append(pad_w(fcw))
    v_rows[_FC_B_ROW] = pad_v(fcb)

    w_slab = jnp.concatenate(w_rows, axis=0).astype(jnp.bfloat16)   # [8*128, 128]
    v_slab = jnp.concatenate(v_rows, axis=0)                        # [32, 128] f32
    assert w_slab.shape == (_W_ROWS, LANES)
    return w_slab, v_slab


# --------------------- pure f32 reference (module semantics) -----------------
def _forward_f32(L, x, flat):
    idx = 0

    def take(k):
        nonlocal idx
        v = flat[idx:idx + k]
        idx += k
        return v

    def cheb(xx, w0, w1, w2, b):
        t0 = xx
        t1 = jnp.dot(L, t0)
        t2 = 2.0 * jnp.dot(L, t1) - t0
        return jnp.dot(t0, w0) + jnp.dot(t1, w1) + jnp.dot(t2, w2) + b

    def bn(xx, g, b):
        mu = jnp.mean(xx, axis=0, keepdims=True)
        var = jnp.mean((xx - mu) ** 2, axis=0, keepdims=True)
        return g * (xx - mu) * lax.rsqrt(var + EPS) + b

    def ln(xx, g, b):
        mu = jnp.mean(xx, axis=-1, keepdims=True)
        var = jnp.mean((xx - mu) ** 2, axis=-1, keepdims=True)
        return g * (xx - mu) * lax.rsqrt(var + EPS) + b

    h = x
    for blk in range(3):
        (w10, w11, w12, b1, w20, w21, w22, b2,
         g1, be1, g2, be2, lg, lb) = take(14)
        if blk == 0:
            sw, sb = take(2)
            residual = jnp.dot(h, sw) + sb
        else:
            residual = h
        a = jnp.maximum(bn(cheb(h, w10, w11, w12, b1), g1, be1), 0.0)
        r = bn(cheb(a, w20, w21, w22, b2), g2, be2) + residual
        h = jnp.maximum(ln(r, lg, lb), 0.0)
    fcw, fcb = take(2)
    return jnp.dot(h, fcw) + fcb


# --------------------------------- main ---------------------------------------
if __name__ == "__main__":
    B, N, IN_DIM, HIDDEN, OUT_DIM = 2, 16, 8, 32, 16
    assert 3 * HIDDEN <= LANES and IN_DIM <= HIDDEN   # lane-packing requirement

    key = jax.random.PRNGKey(0)
    kx, kp = jax.random.split(key)
    x = jax.random.normal(kx, (B, N, IN_DIM), jnp.float32)

    # deterministic undirected ring graphs (stride 1 and stride 3);
    # edge_weight is unused by the module (ChebConv is called without it).
    def ring_edges(n, step):
        s = jnp.arange(n, dtype=jnp.int32)
        d = (s + step) % n
        return jnp.stack([jnp.concatenate([s, d]), jnp.concatenate([d, s])])

    edge_indices = [ring_edges(N, 1), ring_edges(N, 3)]

    flat = init_params(kp, IN_DIM, HIDDEN, OUT_DIM)
    w_slab, v_slab = pack_params(flat, HIDDEN)

    Lcat_f32 = jnp.stack([build_lcat(ei, N) for ei in edge_indices])  # [B, 2N, N] f32
    Lcat = Lcat_f32.astype(jnp.bfloat16)
    x_pad = jnp.zeros((B, N, LANES), jnp.float32).at[..., :IN_DIM].set(x)

    out = hierarchical_graph_module(x_pad, Lcat, w_slab, v_slab,
                                    hid=HIDDEN, out_dim=OUT_DIM)
    out = jax.block_until_ready(out)
    assert out.shape == (B, N, OUT_DIM)

    # (1) tight check: pure-JAX mirror of the packed / fused / bf16 kernel math
    for b in range(B):
        ref_packed = _packed_forward(
            Lcat[b], x_pad[b],
            lambda off: w_slab[off:off + LANES, :],
            lambda row: v_slab[row:row + 1, :],
            HIDDEN, roll=lambda a, s: jnp.roll(a, s, axis=1))[:, :OUT_DIM]
        assert jnp.allclose(out[b], ref_packed, atol=2e-3, rtol=2e-3), \
            f"graph {b}: mismatch vs packed JAX reference"

    # (2) sanity check vs the original (unfused, pure-f32) module semantics;
    #     loose tolerance accounts for bf16 MXU operands in the kernel.
    for b in range(B):
        ref_f32 = _forward_f32(Lcat_f32[b, :N], x[b], flat)
        assert float(jnp.max(jnp.abs(out[b] - ref_f32))) < 0.25, \
            f"graph {b}: mismatch vs f32 module semantics"

    print("KERNEL_OK")
</pallas_src>

<mosaic_0001>
module attributes {stable_mosaic.version = 11 : i64} {
  func.func @hgm_kernel(%arg0: i32, %arg1: memref<1x32x16xbf16, #tpu.memory_space<vmem>>, %arg2: memref<1x16x128xf32, #tpu.memory_space<vmem>>, %arg3: memref<1024x128xbf16, #tpu.memory_space<vmem>>, %arg4: memref<32x128xf32, #tpu.memory_space<vmem>>, %arg5: memref<1x16x128xf32, #tpu.memory_space<vmem>>) attributes {dimension_semantics = [#tpu.dimension_semantics<parallel>], iteration_bounds = array<i64: 2>, scalar_prefetch = 0 : i64, scratch_operands = 0 : i64, tpu.core_type = #tpu.core_type<tc>, window_params = [{transform_indices = @transform_0, window_bounds = array<i64: 1, 32, 16>}, {transform_indices = @transform_1, window_bounds = array<i64: 1, 16, 128>}, {pipeline_mode = #tpu.pipeline_mode<synchronous>, transform_indices = @transform_2, window_bounds = array<i64: 1024, 128>}, {pipeline_mode = #tpu.pipeline_mode<synchronous>, transform_indices = @transform_3, window_bounds = array<i64: 32, 128>}, {transform_indices = @transform_4, window_bounds = array<i64: 1, 16, 128>}]} {
    %c0 = arith.constant 0 : index
    %c0_0 = arith.constant 0 : index
    %c0_1 = arith.constant 0 : index
    %0 = vector.load %arg1[%c0, %c0_0, %c0_1] : memref<1x32x16xbf16, #tpu.memory_space<vmem>>, vector<1x32x16xbf16>
    %1 = vector.shape_cast %0 : vector<1x32x16xbf16> to vector<32x16xbf16>
    %c0_2 = arith.constant 0 : index
    %c0_3 = arith.constant 0 : index
    %c0_4 = arith.constant 0 : index
    %2 = vector.load %arg2[%c0_2, %c0_3, %c0_4] : memref<1x16x128xf32, #tpu.memory_space<vmem>>, vector<1x16x128xf32>
    %3 = vector.shape_cast %2 : vector<1x16x128xf32> to vector<16x128xf32>
    %4 = tpu.iota {dimensions = array<i32: 1>} : vector<1x128xi32>
    %c32_i32 = arith.constant 32 : i32
    %5 = vector.broadcast %c32_i32 : i32 to vector<1x128xi32>
    %6 = arith.cmpi slt, %4, %5 : vector<1x128xi32>
    %7 = arith.extui %6 : vector<1x128xi1> to vector<1x128xi32>
    %8 = arith.sitofp %7 : vector<1x128xi32> to vector<1x128xf32>
    %9 = arith.truncf %3 : vector<16x128xf32> to vector<16x128xbf16>
    %c256 = arith.constant 256 : index
    %c0_5 = arith.constant 0 : index
    %10 = vector.load %arg3[%c256, %c0_5] : memref<1024x128xbf16, #tpu.memory_space<vmem>>, vector<128x128xbf16>
    %cst = arith.constant dense<0.000000e+00> : vector<16x128xf32>
    %11 = tpu.matmul %9, %10, %cst {dimension_numbers = #tpu.dot_dimension_numbers<[1], [0], [0], [1], [0, 0, 1, 1], [], []>} : vector<16x128xbf16>, vector<128x128xbf16>, vector<16x128xf32> -> vector<16x128xf32>
    %c24 = arith.constant 24 : index
    %c0_6 = arith.constant 0 : index
    %12 = vector.load %arg4[%c24, %c0_6] : memref<32x128xf32, #tpu.memory_space<vmem>>, vector<1x128xf32>
    %13 = vector.broadcast %12 : vector<1x128xf32> to vector<16x128xf32>
    %14 = arith.addf %11, %13 : vector<16x128xf32>
    %c0_7 = arith.constant 0 : index
    %c0_8 = arith.constant 0 : index
    %15 = vector.load %arg4[%c0_7, %c0_8] : memref<32x128xf32, #tpu.memory_space<vmem>>, vector<1x128xf32>
    %16 = arith.truncf %3 : vector<16x128xf32> to vector<16x128xbf16>
    %cst_9 = arith.constant dense<0.000000e+00> : vector<32x128xf32>
    %17 = tpu.matmul %1, %16, %cst_9 {dimension_numbers = #tpu.dot_dimension_numbers<[1], [0], [0], [1], [0, 0, 1, 1], [], []>} : vector<32x16xbf16>, vector<16x128xbf16>, vector<32x128xf32> -> vector<32x128xf32>
    %18 = vector.extract_strided_slice %17 {offsets = [0, 0], sizes = [16, 128], strides = [1, 1]} : vector<32x128xf32> to vector<16x128xf32>
    %19 = vector.extract_strided_slice %17 {offsets = [16, 0], sizes = [16, 128], strides = [1, 1]} : vector<32x128xf32> to vector<16x128xf32>
    %c32_i32_10 = arith.constant 32 : i32
    %20 = tpu.dynamic_rotate %18 by %c32_i32_10 dim 1 : vector<16x128xf32>, i32 -> vector<16x128xf32>
    %21 = arith.addf %3, %20 : vector<16x128xf32>
    %c64_i32 = arith.constant 64 : i32
    %22 = tpu.dynamic_rotate %19 by %c64_i32 dim 1 : vector<16x128xf32>, i32 -> vector<16x128xf32>
    %23 = arith.addf %21, %22 : vector<16x128xf32>
    %24 = arith.truncf %23 : vector<16x128xf32> to vector<16x128xbf16>
    %c0_11 = arith.constant 0 : index
    %c0_12 = arith.constant 0 : index
    %25 = vector.load %arg3[%c0_11, %c0_12] : memref<1024x128xbf16, #tpu.memory_space<vmem>>, vector<128x128xbf16>
    %cst_13 = arith.constant dense<0.000000e+00> : vector<16x128xf32>
    %26 = tpu.matmul %24, %25, %cst_13 {dimension_numbers = #tpu.dot_dimension_numbers<[1], [0], [0], [1], [0, 0, 1, 1], [], []>} : vector<16x128xbf16>, vector<128x128xbf16>, vector<16x128xf32> -> vector<16x128xf32>
    %27 = vector.broadcast %15 : vector<1x128xf32> to vector<16x128xf32>
    %28 = arith.addf %26, %27 : vector<16x128xf32>
    %c1 = arith.constant 1 : index
    %c0_14 = arith.constant 0 : index
    %29 = vector.load %arg4[%c1, %c0_14] : memref<32x128xf32, #tpu.memory_space<vmem>>, vector<1x128xf32>
    %c2 = arith.constant 2 : index
    %c0_15 = arith.constant 0 : index
    %30 = vector.load %arg4[%c2, %c0_15] : memref<32x128xf32, #tpu.memory_space<vmem>>, vector<1x128xf32>
    %cst_16 = arith.constant dense<0.000000e+00> : vector<128xf32>
    %31 = vector.multi_reduction <add>, %28, %cst_16 [0] : vector<16x128xf32> to vector<128xf32>
    %32 = vector.shape_cast %31 : vector<128xf32> to vector<1x128xf32>
    %cst_17 = arith.constant 1.600000e+01 : f32
    %33 = vector.broadcast %cst_17 : f32 to vector<1x128xf32>
    %34 = arith.divf %32, %33 : vector<1x128xf32>
    %35 = vector.broadcast %34 : vector<1x128xf32> to vector<16x128xf32>
    %36 = arith.subf %28, %35 : vector<16x128xf32>
    %37 = arith.mulf %36, %36 : vector<16x128xf32>
    %cst_18 = arith.constant dense<0.000000e+00> : vector<128xf32>
    %38 = vector.multi_reduction <add>, %37, %cst_18 [0] : vector<16x128xf32> to vector<128xf32>
    %39 = vector.shape_cast %38 : vector<128xf32> to vector<1x128xf32>
    %cst_19 = arith.constant 1.600000e+01 : f32
    %40 = vector.broadcast %cst_19 : f32 to vector<1x128xf32>
    %41 = arith.divf %39, %40 : vector<1x128xf32>
    %42 = vector.broadcast %34 : vector<1x128xf32> to vector<16x128xf32>
    %43 = arith.subf %28, %42 : vector<16x128xf32>
    %44 = vector.broadcast %29 : vector<1x128xf32> to vector<16x128xf32>
    %45 = arith.mulf %44, %43 : vector<16x128xf32>
    %cst_20 = arith.constant 9.99999974E-6 : f32
    %46 = vector.broadcast %cst_20 : f32 to vector<1x128xf32>
    %47 = arith.addf %41, %46 : vector<1x128xf32>
    %48 = math.rsqrt %47 : vector<1x128xf32>
    %49 = vector.broadcast %48 : vector<1x128xf32> to vector<16x128xf32>
    %50 = arith.mulf %45, %49 : vector<16x128xf32>
    %51 = vector.broadcast %30 : vector<1x128xf32> to vector<16x128xf32>
    %52 = arith.addf %50, %51 : vector<16x128xf32>
    %cst_21 = arith.constant 0.000000e+00 : f32
    %53 = vector.broadcast %cst_21 : f32 to vector<16x128xf32>
    %54 = arith.maximumf %52, %53 : vector<16x128xf32>
    %c3 = arith.constant 3 : index
    %c0_22 = arith.constant 0 : index
    %55 = vector.load %arg4[%c3, %c0_22] : memref<32x128xf32, #tpu.memory_space<vmem>>, vector<1x128xf32>
    %56 = arith.truncf %54 : vector<16x128xf32> to vector<16x128xbf16>
    %cst_23 = arith.constant dense<0.000000e+00> : vector<32x128xf32>
    %57 = tpu.matmul %1, %56, %cst_23 {dimension_numbers = #tpu.dot_dimension_numbers<[1], [0], [0], [1], [0, 0, 1, 1], [], []>} : vector<32x16xbf16>, vector<16x128xbf16>, vector<32x128xf32> -> vector<32x128xf32>
    %58 = vector.extract_strided_slice %57 {offsets = [0, 0], sizes = [16, 128], strides = [1, 1]} : vector<32x128xf32> to vector<16x128xf32>
    %59 = vector.extract_strided_slice %57 {offsets = [16, 0], sizes = [16, 128], strides = [1, 1]} : vector<32x128xf32> to vector<16x128xf32>
    %c32_i32_24 = arith.constant 32 : i32
    %60 = tpu.dynamic_rotate %58 by %c32_i32_24 dim 1 : vector<16x128xf32>, i32 -> vector<16x128xf32>
    %61 = arith.addf %54, %60 : vector<16x128xf32>
    %c64_i32_25 = arith.constant 64 : i32
    %62 = tpu.dynamic_rotate %59 by %c64_i32_25 dim 1 : vector<16x128xf32>, i32 -> vector<16x128xf32>
    %63 = arith.addf %61, %62 : vector<16x128xf32>
    %64 = arith.truncf %63 : vector<16x128xf32> to vector<16x128xbf16>
    %c128 = arith.constant 128 : index
    %c0_26 = arith.constant 0 : index
    %65 = vector.load %arg3[%c128, %c0_26] : memref<1024x128xbf16, #tpu.memory_space<vmem>>, vector<128x128xbf16>
    %cst_27 = arith.constant dense<0.000000e+00> : vector<16x128xf32>
    %66 = tpu.matmul %64, %65, %cst_27 {dimension_numbers = #tpu.dot_dimension_numbers<[1], [0], [0], [1], [0, 0, 1, 1], [], []>} : vector<16x128xbf16>, vector<128x128xbf16>, vector<16x128xf32> -> vector<16x128xf32>
    %67 = vector.broadcast %55 : vector<1x128xf32> to vector<16x128xf32>
    %68 = arith.addf %66, %67 : vector<16x128xf32>
    %c4 = arith.constant 4 : index
    %c0_28 = arith.constant 0 : index
    %69 = vector.load %arg4[%c4, %c0_28] : memref<32x128xf32, #tpu.memory_space<vmem>>, vector<1x128xf32>
    %c5 = arith.constant 5 : index
    %c0_29 = arith.constant 0 : index
    %70 = vector.load %arg4[%c5, %c0_29] : memref<32x128xf32, #tpu.memory_space<vmem>>, vector<1x128xf32>
    %cst_30 = arith.constant dense<0.000000e+00> : vector<128xf32>
    %71 = vector.multi_reduction <add>, %68, %cst_30 [0] : vector<16x128xf32> to vector<128xf32>
    %72 = vector.shape_cast %71 : vector<128xf32> to vector<1x128xf32>
    %cst_31 = arith.constant 1.600000e+01 : f32
    %73 = vector.broadcast %cst_31 : f32 to vector<1x128xf32>
    %74 = arith.divf %72, %73 : vector<1x128xf32>
    %75 = vector.broadcast %74 : vector<1x128xf32> to vector<16x128xf32>
    %76 = arith.subf %68, %75 : vector<16x128xf32>
    %77 = arith.mulf %76, %76 : vector<16x128xf32>
    %cst_32 = arith.constant dense<0.000000e+00> : vector<128xf32>
    %78 = vector.multi_reduction <add>, %77, %cst_32 [0] : vector<16x128xf32> to vector<128xf32>
    %79 = vector.shape_cast %78 : vector<128xf32> to vector<1x128xf32>
    %cst_33 = arith.constant 1.600000e+01 : f32
    %80 = vector.broadcast %cst_33 : f32 to vector<1x128xf32>
    %81 = arith.divf %79, %80 : vector<1x128xf32>
    %82 = vector.broadcast %74 : vector<1x128xf32> to vector<16x128xf32>
    %83 = arith.subf %68, %82 : vector<16x128xf32>
    %84 = vector.broadcast %69 : vector<1x128xf32> to vector<16x128xf32>
    %85 = arith.mulf %84, %83 : vector<16x128xf32>
    %cst_34 = arith.constant 9.99999974E-6 : f32
    %86 = vector.broadcast %cst_34 : f32 to vector<1x128xf32>
    %87 = arith.addf %81, %86 : vector<1x128xf32>
    %88 = math.rsqrt %87 : vector<1x128xf32>
    %89 = vector.broadcast %88 : vector<1x128xf32> to vector<16x128xf32>
    %90 = arith.mulf %85, %89 : vector<16x128xf32>
    %91 = vector.broadcast %70 : vector<1x128xf32> to vector<16x128xf32>
    %92 = arith.addf %90, %91 : vector<16x128xf32>
    %93 = arith.addf %92, %14 : vector<16x128xf32>
    %c6 = arith.constant 6 : index
    %c0_35 = arith.constant 0 : index
    %94 = vector.load %arg4[%c6, %c0_35] : memref<32x128xf32, #tpu.memory_space<vmem>>, vector<1x128xf32>
    %c7 = arith.constant 7 : index
    %c0_36 = arith.constant 0 : index
    %95 = vector.load %arg4[%c7, %c0_36] : memref<32x128xf32, #tpu.memory_space<vmem>>, vector<1x128xf32>
    %96 = vector.broadcast %8 : vector<1x128xf32> to vector<16x128xf32>
    %97 = arith.mulf %93, %96 : vector<16x128xf32>
    %cst_37 = arith.constant dense<0.000000e+00> : vector<16xf32>
    %98 = vector.multi_reduction <add>, %97, %cst_37 [1] : vector<16x128xf32> to vector<16xf32>
    %99 = vector.shape_cast %98 : vector<16xf32> to vector<16x1xf32>
    %cst_38 = arith.constant 3.125000e-02 : f32
    %100 = vector.broadcast %cst_38 : f32 to vector<16x1xf32>
    %101 = arith.mulf %99, %100 : vector<16x1xf32>
    %102 = vector.broadcast %101 : vector<16x1xf32> to vector<16x128xf32>
    %103 = arith.subf %93, %102 : vector<16x128xf32>
    %104 = vector.broadcast %8 : vector<1x128xf32> to vector<16x128xf32>
    %105 = arith.mulf %103, %104 : vector<16x128xf32>
    %106 = arith.mulf %105, %105 : vector<16x128xf32>
    %cst_39 = arith.constant dense<0.000000e+00> : vector<16xf32>
    %107 = vector.multi_reduction <add>, %106, %cst_39 [1] : vector<16x128xf32> to vector<16xf32>
    %108 = vector.shape_cast %107 : vector<16xf32> to vector<16x1xf32>
    %cst_40 = arith.constant 3.125000e-02 : f32
    %109 = vector.broadcast %cst_40 : f32 to vector<16x1xf32>
    %110 = arith.mulf %108, %109 : vector<16x1xf32>
    %111 = vector.broadcast %101 : vector<16x1xf32> to vector<16x128xf32>
    %112 = arith.subf %93, %111 : vector<16x128xf32>
    %113 = vector.broadcast %94 : vector<1x128xf32> to vector<16x128xf32>
    %114 = arith.mulf %113, %112 : vector<16x128xf32>
    %cst_41 = arith.constant 9.99999974E-6 : f32
    %115 = vector.broadcast %cst_41 : f32 to vector<16x1xf32>
    %116 = arith.addf %110, %115 : vector<16x1xf32>
    %117 = math.rsqrt %116 : vector<16x1xf32>
    %118 = vector.broadcast %117 : vector<16x1xf32> to vector<16x128xf32>
    %119 = arith.mulf %114, %118 : vector<16x128xf32>
    %120 = vector.broadcast %95 : vector<1x128xf32> to vector<16x128xf32>
    %121 = arith.addf %119, %120 : vector<16x128xf32>
    %cst_42 = arith.constant 0.000000e+00 : f32
    %122 = vector.broadcast %cst_42 : f32 to vector<16x128xf32>
    %123 = arith.maximumf %121, %122 : vector<16x128xf32>
    %c8 = arith.constant 8 : index
    %c0_43 = arith.constant 0 : index
    %124 = vector.load %arg4[%c8, %c0_43] : memref<32x128xf32, #tpu.memory_space<vmem>>, vector<1x128xf32>
    %125 = arith.truncf %123 : vector<16x128xf32> to vector<16x128xbf16>
    %cst_44 = arith.constant dense<0.000000e+00> : vector<32x128xf32>
    %126 = tpu.matmul %1, %125, %cst_44 {dimension_numbers = #tpu.dot_dimension_numbers<[1], [0], [0], [1], [0, 0, 1, 1], [], []>} : vector<32x16xbf16>, vector<16x128xbf16>, vector<32x128xf32> -> vector<32x128xf32>
    %127 = vector.extract_strided_slice %126 {offsets = [0, 0], sizes = [16, 128], strides = [1, 1]} : vector<32x128xf32> to vector<16x128xf32>
    %128 = vector.extract_strided_slice %126 {offsets = [16, 0], sizes = [16, 128], strides = [1, 1]} : vector<32x128xf32> to vector<16x128xf32>
    %c32_i32_45 = arith.constant 32 : i32
    %129 = tpu.dynamic_rotate %127 by %c32_i32_45 dim 1 : vector<16x128xf32>, i32 -> vector<16x128xf32>
    %130 = arith.addf %123, %129 : vector<16x128xf32>
    %c64_i32_46 = arith.constant 64 : i32
    %131 = tpu.dynamic_rotate %128 by %c64_i32_46 dim 1 : vector<16x128xf32>, i32 -> vector<16x128xf32>
    %132 = arith.addf %130, %131 : vector<16x128xf32>
    %133 = arith.truncf %132 : vector<16x128xf32> to vector<16x128xbf16>
    %c384 = arith.constant 384 : index
    %c0_47 = arith.constant 0 : index
    %134 = vector.load %arg3[%c384, %c0_47] : memref<1024x128xbf16, #tpu.memory_space<vmem>>, vector<128x128xbf16>
    %cst_48 = arith.constant dense<0.000000e+00> : vector<16x128xf32>
    %135 = tpu.matmul %133, %134, %cst_48 {dimension_numbers = #tpu.dot_dimension_numbers<[1], [0], [0], [1], [0, 0, 1, 1], [], []>} : vector<16x128xbf16>, vector<128x128xbf16>, vector<16x128xf32> -> vector<16x128xf32>
    %136 = vector.broadcast %124 : vector<1x128xf32> to vector<16x128xf32>
    %137 = arith.addf %135, %136 : vector<16x128xf32>
    %c9 = arith.constant 9 : index
    %c0_49 = arith.constant 0 : index
    %138 = vector.load %arg4[%c9, %c0_49] : memref<32x128xf32, #tpu.memory_space<vmem>>, vector<1x128xf32>
    %c10 = arith.constant 10 : index
    %c0_50 = arith.constant 0 : index
    %139 = vector.load %arg4[%c10, %c0_50] : memref<32x128xf32, #tpu.memory_space<vmem>>, vector<1x128xf32>
    %cst_51 = arith.constant dense<0.000000e+00> : vector<128xf32>
    %140 = vector.multi_reduction <add>, %137, %cst_51 [0] : vector<16x128xf32> to vector<128xf32>
    %141 = vector.shape_cast %140 : vector<128xf32> to vector<1x128xf32>
    %cst_52 = arith.constant 1.600000e+01 : f32
    %142 = vector.broadcast %cst_52 : f32 to vector<1x128xf32>
    %143 = arith.divf %141, %142 : vector<1x128xf32>
    %144 = vector.broadcast %143 : vector<1x128xf32> to vector<16x128xf32>
    %145 = arith.subf %137, %144 : vector<16x128xf32>
    %146 = arith.mulf %145, %145 : vector<16x128xf32>
    %cst_53 = arith.constant dense<0.000000e+00> : vector<128xf32>
    %147 = vector.multi_reduction <add>, %146, %cst_53 [0] : vector<16x128xf32> to vector<128xf32>
    %148 = vector.shape_cast %147 : vector<128xf32> to vector<1x128xf32>
    %cst_54 = arith.constant 1.600000e+01 : f32
    %149 = vector.broadcast %cst_54 : f32 to vector<1x128xf32>
    %150 = arith.divf %148, %149 : vector<1x128xf32>
    %151 = vector.broadcast %143 : vector<1x128xf32> to vector<16x128xf32>
    %152 = arith.subf %137, %151 : vector<16x128xf32>
    %153 = vector.broadcast %138 : vector<1x128xf32> to vector<16x128xf32>
    %154 = arith.mulf %153, %152 : vector<16x128xf32>
    %cst_55 = arith.constant 9.99999974E-6 : f32
    %155 = vector.broadcast %cst_55 : f32 to vector<1x128xf32>
    %156 = arith.addf %150, %155 : vector<1x128xf32>
    %157 = math.rsqrt %156 : vector<1x128xf32>
    %158 = vector.broadcast %157 : vector<1x128xf32> to vector<16x128xf32>
    %159 = arith.mulf %154, %158 : vector<16x128xf32>
    %160 = vector.broadcast %139 : vector<1x128xf32> to vector<16x128xf32>
    %161 = arith.addf %159, %160 : vector<16x128xf32>
    %cst_56 = arith.constant 0.000000e+00 : f32
    %162 = vector.broadcast %cst_56 : f32 to vector<16x128xf32>
    %163 = arith.maximumf %161, %162 : vector<16x128xf32>
    %c11 = arith.constant 11 : index
    %c0_57 = arith.constant 0 : index
    %164 = vector.load %arg4[%c11, %c0_57] : memref<32x128xf32, #tpu.memory_space<vmem>>, vector<1x128xf32>
    %165 = arith.truncf %163 : vector<16x128xf32> to vector<16x128xbf16>
    %cst_58 = arith.constant dense<0.000000e+00> : vector<32x128xf32>
    %166 = tpu.matmul %1, %165, %cst_58 {dimension_numbers = #tpu.dot_dimension_numbers<[1], [0], [0], [1], [0, 0, 1, 1], [], []>} : vector<32x16xbf16>, vector<16x128xbf16>, vector<32x128xf32> -> vector<32x128xf32>
    %167 = vector.extract_strided_slice %166 {offsets = [0, 0], sizes = [16, 128], strides = [1, 1]} : vector<32x128xf32> to vector<16x128xf32>
    %168 = vector.extract_strided_slice %166 {offsets = [16, 0], sizes = [16, 128], strides = [1, 1]} : vector<32x128xf32> to vector<16x128xf32>
    %c32_i32_59 = arith.constant 32 : i32
    %169 = tpu.dynamic_rotate %167 by %c32_i32_59 dim 1 : vector<16x128xf32>, i32 -> vector<16x128xf32>
    %170 = arith.addf %163, %169 : vector<16x128xf32>
    %c64_i32_60 = arith.constant 64 : i32
    %171 = tpu.dynamic_rotate %168 by %c64_i32_60 dim 1 : vector<16x128xf32>, i32 -> vector<16x128xf32>
    %172 = arith.addf %170, %171 : vector<16x128xf32>
    %173 = arith.truncf %172 : vector<16x128xf32> to vector<16x128xbf16>
    %c512 = arith.constant 512 : index
    %c0_61 = arith.constant 0 : index
    %174 = vector.load %arg3[%c512, %c0_61] : memref<1024x128xbf16, #tpu.memory_space<vmem>>, vector<128x128xbf16>
    %cst_62 = arith.constant dense<0.000000e+00> : vector<16x128xf32>
    %175 = tpu.matmul %173, %174, %cst_62 {dimension_numbers = #tpu.dot_dimension_numbers<[1], [0], [0], [1], [0, 0, 1, 1], [], []>} : vector<16x128xbf16>, vector<128x128xbf16>, vector<16x128xf32> -> vector<16x128xf32>
    %176 = vector.broadcast %164 : vector<1x128xf32> to vector<16x128xf32>
    %177 = arith.addf %175, %176 : vector<16x128xf32>
    %c12 = arith.constant 12 : index
    %c0_63 = arith.constant 0 : index
    %178 = vector.load %arg4[%c12, %c0_63] : memref<32x128xf32, #tpu.memory_space<vmem>>, vector<1x128xf32>
    %c13 = arith.constant 13 : index
    %c0_64 = arith.constant 0 : index
    %179 = vector.load %arg4[%c13, %c0_64] : memref<32x128xf32, #tpu.memory_space<vmem>>, vector<1x128xf32>
    %cst_65 = arith.constant dense<0.000000e+00> : vector<128xf32>
    %180 = vector.multi_reduction <add>, %177, %cst_65 [0] : vector<16x128xf32> to vector<128xf32>
    %181 = vector.shape_cast %180 : vector<128xf32> to vector<1x128xf32>
    %cst_66 = arith.constant 1.600000e+01 : f32
    %182 = vector.broadcast %cst_66 : f32 to vector<1x128xf32>
    %183 = arith.divf %181, %182 : vector<1x128xf32>
    %184 = vector.broadcast %183 : vector<1x128xf32> to vector<16x128xf32>
    %185 = arith.subf %177, %184 : vector<16x128xf32>
    %186 = arith.mulf %185, %185 : vector<16x128xf32>
    %cst_67 = arith.constant dense<0.000000e+00> : vector<128xf32>
    %187 = vector.multi_reduction <add>, %186, %cst_67 [0] : vector<16x128xf32> to vector<128xf32>
    %188 = vector.shape_cast %187 : vector<128xf32> to vector<1x128xf32>
    %cst_68 = arith.constant 1.600000e+01 : f32
    %189 = vector.broadcast %cst_68 : f32 to vector<1x128xf32>
    %190 = arith.divf %188, %189 : vector<1x128xf32>
    %191 = vector.broadcast %183 : vector<1x128xf32> to vector<16x128xf32>
    %192 = arith.subf %177, %191 : vector<16x128xf32>
    %193 = vector.broadcast %178 : vector<1x128xf32> to vector<16x128xf32>
    %194 = arith.mulf %193, %192 : vector<16x128xf32>
    %cst_69 = arith.constant 9.99999974E-6 : f32
    %195 = vector.broadcast %cst_69 : f32 to vector<1x128xf32>
    %196 = arith.addf %190, %195 : vector<1x128xf32>
    %197 = math.rsqrt %196 : vector<1x128xf32>
    %198 = vector.broadcast %197 : vector<1x128xf32> to vector<16x128xf32>
    %199 = arith.mulf %194, %198 : vector<16x128xf32>
    %200 = vector.broadcast %179 : vector<1x128xf32> to vector<16x128xf32>
    %201 = arith.addf %199, %200 : vector<16x128xf32>
    %202 = arith.addf %201, %123 : vector<16x128xf32>
    %c14 = arith.constant 14 : index
    %c0_70 = arith.constant 0 : index
    %203 = vector.load %arg4[%c14, %c0_70] : memref<32x128xf32, #tpu.memory_space<vmem>>, vector<1x128xf32>
    %c15 = arith.constant 15 : index
    %c0_71 = arith.constant 0 : index
    %204 = vector.load %arg4[%c15, %c0_71] : memref<32x128xf32, #tpu.memory_space<vmem>>, vector<1x128xf32>
    %205 = vector.broadcast %8 : vector<1x128xf32> to vector<16x128xf32>
    %206 = arith.mulf %202, %205 : vector<16x128xf32>
    %cst_72 = arith.constant dense<0.000000e+00> : vector<16xf32>
    %207 = vector.multi_reduction <add>, %206, %cst_72 [1] : vector<16x128xf32> to vector<16xf32>
    %208 = vector.shape_cast %207 : vector<16xf32> to vector<16x1xf32>
    %cst_73 = arith.constant 3.125000e-02 : f32
    %209 = vector.broadcast %cst_73 : f32 to vector<16x1xf32>
    %210 = arith.mulf %208, %209 : vector<16x1xf32>
    %211 = vector.broadcast %210 : vector<16x1xf32> to vector<16x128xf32>
    %212 = arith.subf %202, %211 : vector<16x128xf32>
    %213 = vector.broadcast %8 : vector<1x128xf32> to vector<16x128xf32>
    %214 = arith.mulf %212, %213 : vector<16x128xf32>
    %215 = arith.mulf %214, %214 : vector<16x128xf32>
    %cst_74 = arith.constant dense<0.000000e+00> : vector<16xf32>
    %216 = vector.multi_reduction <add>, %215, %cst_74 [1] : vector<16x128xf32> to vector<16xf32>
    %217 = vector.shape_cast %216 : vector<16xf32> to vector<16x1xf32>
    %cst_75 = arith.constant 3.125000e-02 : f32
    %218 = vector.broadcast %cst_75 : f32 to vector<16x1xf32>
    %219 = arith.mulf %217, %218 : vector<16x1xf32>
    %220 = vector.broadcast %210 : vector<16x1xf32> to vector<16x128xf32>
    %221 = arith.subf %202, %220 : vector<16x128xf32>
    %222 = vector.broadcast %203 : vector<1x128xf32> to vector<16x128xf32>
    %223 = arith.mulf %222, %221 : vector<16x128xf32>
    %cst_76 = arith.constant 9.99999974E-6 : f32
    %224 = vector.broadcast %cst_76 : f32 to vector<16x1xf32>
    %225 = arith.addf %219, %224 : vector<16x1xf32>
    %226 = math.rsqrt %225 : vector<16x1xf32>
    %227 = vector.broadcast %226 : vector<16x1xf32> to vector<16x128xf32>
    %228 = arith.mulf %223, %227 : vector<16x128xf32>
    %229 = vector.broadcast %204 : vector<1x128xf32> to vector<16x128xf32>
    %230 = arith.addf %228, %229 : vector<16x128xf32>
    %cst_77 = arith.constant 0.000000e+00 : f32
    %231 = vector.broadcast %cst_77 : f32 to vector<16x128xf32>
    %232 = arith.maximumf %230, %231 : vector<16x128xf32>
    %c16 = arith.constant 16 : index
    %c0_78 = arith.constant 0 : index
    %233 = vector.load %arg4[%c16, %c0_78] : memref<32x128xf32, #tpu.memory_space<vmem>>, vector<1x128xf32>
    %234 = arith.truncf %232 : vector<16x128xf32> to vector<16x128xbf16>
    %cst_79 = arith.constant dense<0.000000e+00> : vector<32x128xf32>
    %235 = tpu.matmul %1, %234, %cst_79 {dimension_numbers = #tpu.dot_dimension_numbers<[1], [0], [0], [1], [0, 0, 1, 1], [], []>} : vector<32x16xbf16>, vector<16x128xbf16>, vector<32x128xf32> -> vector<32x128xf32>
    %236 = vector.extract_strided_slice %235 {offsets = [0, 0], sizes = [16, 128], strides = [1, 1]} : vector<32x128xf32> to vector<16x128xf32>
    %237 = vector.extract_strided_slice %235 {offsets = [16, 0], sizes = [16, 128], strides = [1, 1]} : vector<32x128xf32> to vector<16x128xf32>
    %c32_i32_80 = arith.constant 32 : i32
    %238 = tpu.dynamic_rotate %236 by %c32_i32_80 dim 1 : vector<16x128xf32>, i32 -> vector<16x128xf32>
    %239 = arith.addf %232, %238 : vector<16x128xf32>
    %c64_i32_81 = arith.constant 64 : i32
    %240 = tpu.dynamic_rotate %237 by %c64_i32_81 dim 1 : vector<16x128xf32>, i32 -> vector<16x128xf32>
    %241 = arith.addf %239, %240 : vector<16x128xf32>
    %242 = arith.truncf %241 : vector<16x128xf32> to vector<16x128xbf16>
    %c640 = arith.constant 640 : index
    %c0_82 = arith.constant 0 : index
    %243 = vector.load %arg3[%c640, %c0_82] : memref<1024x128xbf16, #tpu.memory_space<vmem>>, vector<128x128xbf16>
    %cst_83 = arith.constant dense<0.000000e+00> : vector<16x128xf32>
    %244 = tpu.matmul %242, %243, %cst_83 {dimension_numbers = #tpu.dot_dimension_numbers<[1], [0], [0], [1], [0, 0, 1, 1], [], []>} : vector<16x128xbf16>, vector<128x128xbf16>, vector<16x128xf32> -> vector<16x128xf32>
    %245 = vector.broadcast %233 : vector<1x128xf32> to vector<16x128xf32>
    %246 = arith.addf %244, %245 : vector<16x128xf32>
    %c17 = arith.constant 17 : index
    %c0_84 = arith.constant 0 : index
    %247 = vector.load %arg4[%c17, %c0_84] : memref<32x128xf32, #tpu.memory_space<vmem>>, vector<1x128xf32>
    %c18 = arith.constant 18 : index
    %c0_85 = arith.constant 0 : index
    %248 = vector.load %arg4[%c18, %c0_85] : memref<32x128xf32, #tpu.memory_space<vmem>>, vector<1x128xf32>
    %cst_86 = arith.constant dense<0.000000e+00> : vector<128xf32>
    %249 = vector.multi_reduction <add>, %246, %cst_86 [0] : vector<16x128xf32> to vector<128xf32>
    %250 = vector.shape_cast %249 : vector<128xf32> to vector<1x128xf32>
    %cst_87 = arith.constant 1.600000e+01 : f32
    %251 = vector.broadcast %cst_87 : f32 to vector<1x128xf32>
    %252 = arith.divf %250, %251 : vector<1x128xf32>
    %253 = vector.broadcast %252 : vector<1x128xf32> to vector<16x128xf32>
    %254 = arith.subf %246, %253 : vector<16x128xf32>
    %255 = arith.mulf %254, %254 : vector<16x128xf32>
    %cst_88 = arith.constant dense<0.000000e+00> : vector<128xf32>
    %256 = vector.multi_reduction <add>, %255, %cst_88 [0] : vector<16x128xf32> to vector<128xf32>
    %257 = vector.shape_cast %256 : vector<128xf32> to vector<1x128xf32>
    %cst_89 = arith.constant 1.600000e+01 : f32
    %258 = vector.broadcast %cst_89 : f32 to vector<1x128xf32>
    %259 = arith.divf %257, %258 : vector<1x128xf32>
    %260 = vector.broadcast %252 : vector<1x128xf32> to vector<16x128xf32>
    %261 = arith.subf %246, %260 : vector<16x128xf32>
    %262 = vector.broadcast %247 : vector<1x128xf32> to vector<16x128xf32>
    %263 = arith.mulf %262, %261 : vector<16x128xf32>
    %cst_90 = arith.constant 9.99999974E-6 : f32
    %264 = vector.broadcast %cst_90 : f32 to vector<1x128xf32>
    %265 = arith.addf %259, %264 : vector<1x128xf32>
    %266 = math.rsqrt %265 : vector<1x128xf32>
    %267 = vector.broadcast %266 : vector<1x128xf32> to vector<16x128xf32>
    %268 = arith.mulf %263, %267 : vector<16x128xf32>
    %269 = vector.broadcast %248 : vector<1x128xf32> to vector<16x128xf32>
    %270 = arith.addf %268, %269 : vector<16x128xf32>
    %cst_91 = arith.constant 0.000000e+00 : f32
    %271 = vector.broadcast %cst_91 : f32 to vector<16x128xf32>
    %272 = arith.maximumf %270, %271 : vector<16x128xf32>
    %c19 = arith.constant 19 : index
    %c0_92 = arith.constant 0 : index
    %273 = vector.load %arg4[%c19, %c0_92] : memref<32x128xf32, #tpu.memory_space<vmem>>, vector<1x128xf32>
    %274 = arith.truncf %272 : vector<16x128xf32> to vector<16x128xbf16>
    %cst_93 = arith.constant dense<0.000000e+00> : vector<32x128xf32>
    %275 = tpu.matmul %1, %274, %cst_93 {dimension_numbers = #tpu.dot_dimension_numbers<[1], [0], [0], [1], [0, 0, 1, 1], [], []>} : vector<32x16xbf16>, vector<16x128xbf16>, vector<32x128xf32> -> vector<32x128xf32>
    %276 = vector.extract_strided_slice %275 {offsets = [0, 0], sizes = [16, 128], strides = [1, 1]} : vector<32x128xf32> to vector<16x128xf32>
    %277 = vector.extract_strided_slice %275 {offsets = [16, 0], sizes = [16, 128], strides = [1, 1]} : vector<32x128xf32> to vector<16x128xf32>
    %c32_i32_94 = arith.constant 32 : i32
    %278 = tpu.dynamic_rotate %276 by %c32_i32_94 dim 1 : vector<16x128xf32>, i32 -> vector<16x128xf32>
    %279 = arith.addf %272, %278 : vector<16x128xf32>
    %c64_i32_95 = arith.constant 64 : i32
    %280 = tpu.dynamic_rotate %277 by %c64_i32_95 dim 1 : vector<16x128xf32>, i32 -> vector<16x128xf32>
    %281 = arith.addf %279, %280 : vector<16x128xf32>
    %282 = arith.truncf %281 : vector<16x128xf32> to vector<16x128xbf16>
    %c768 = arith.constant 768 : index
    %c0_96 = arith.constant 0 : index
    %283 = vector.load %arg3[%c768, %c0_96] : memref<1024x128xbf16, #tpu.memory_space<vmem>>, vector<128x128xbf16>
    %cst_97 = arith.constant dense<0.000000e+00> : vector<16x128xf32>
    %284 = tpu.matmul %282, %283, %cst_97 {dimension_numbers = #tpu.dot_dimension_numbers<[1], [0], [0], [1], [0, 0, 1, 1], [], []>} : vector<16x128xbf16>, vector<128x128xbf16>, vector<16x128xf32> -> vector<16x128xf32>
    %285 = vector.broadcast %273 : vector<1x128xf32> to vector<16x128xf32>
    %286 = arith.addf %284, %285 : vector<16x128xf32>
    %c20 = arith.constant 20 : index
    %c0_98 = arith.constant 0 : index
    %287 = vector.load %arg4[%c20, %c0_98] : memref<32x128xf32, #tpu.memory_space<vmem>>, vector<1x128xf32>
    %c21 = arith.constant 21 : index
    %c0_99 = arith.constant 0 : index
    %288 = vector.load %arg4[%c21, %c0_99] : memref<32x128xf32, #tpu.memory_space<vmem>>, vector<1x128xf32>
    %cst_100 = arith.constant dense<0.000000e+00> : vector<128xf32>
    %289 = vector.multi_reduction <add>, %286, %cst_100 [0] : vector<16x128xf32> to vector<128xf32>
    %290 = vector.shape_cast %289 : vector<128xf32> to vector<1x128xf32>
    %cst_101 = arith.constant 1.600000e+01 : f32
    %291 = vector.broadcast %cst_101 : f32 to vector<1x128xf32>
    %292 = arith.divf %290, %291 : vector<1x128xf32>
    %293 = vector.broadcast %292 : vector<1x128xf32> to vector<16x128xf32>
    %294 = arith.subf %286, %293 : vector<16x128xf32>
    %295 = arith.mulf %294, %294 : vector<16x128xf32>
    %cst_102 = arith.constant dense<0.000000e+00> : vector<128xf32>
    %296 = vector.multi_reduction <add>, %295, %cst_102 [0] : vector<16x128xf32> to vector<128xf32>
    %297 = vector.shape_cast %296 : vector<128xf32> to vector<1x128xf32>
    %cst_103 = arith.constant 1.600000e+01 : f32
    %298 = vector.broadcast %cst_103 : f32 to vector<1x128xf32>
    %299 = arith.divf %297, %298 : vector<1x128xf32>
    %300 = vector.broadcast %292 : vector<1x128xf32> to vector<16x128xf32>
    %301 = arith.subf %286, %300 : vector<16x128xf32>
    %302 = vector.broadcast %287 : vector<1x128xf32> to vector<16x128xf32>
    %303 = arith.mulf %302, %301 : vector<16x128xf32>
    %cst_104 = arith.constant 9.99999974E-6 : f32
    %304 = vector.broadcast %cst_104 : f32 to vector<1x128xf32>
    %305 = arith.addf %299, %304 : vector<1x128xf32>
    %306 = math.rsqrt %305 : vector<1x128xf32>
    %307 = vector.broadcast %306 : vector<1x128xf32> to vector<16x128xf32>
    %308 = arith.mulf %303, %307 : vector<16x128xf32>
    %309 = vector.broadcast %288 : vector<1x128xf32> to vector<16x128xf32>
    %310 = arith.addf %308, %309 : vector<16x128xf32>
    %311 = arith.addf %310, %232 : vector<16x128xf32>
    %c22 = arith.constant 22 : index
    %c0_105 = arith.constant 0 : index
    %312 = vector.load %arg4[%c22, %c0_105] : memref<32x128xf32, #tpu.memory_space<vmem>>, vector<1x128xf32>
    %c23 = arith.constant 23 : index
    %c0_106 = arith.constant 0 : index
    %313 = vector.load %arg4[%c23, %c0_106] : memref<32x128xf32, #tpu.memory_space<vmem>>, vector<1x128xf32>
    %314 = vector.broadcast %8 : vector<1x128xf32> to vector<16x128xf32>
    %315 = arith.mulf %311, %314 : vector<16x128xf32>
    %cst_107 = arith.constant dense<0.000000e+00> : vector<16xf32>
    %316 = vector.multi_reduction <add>, %315, %cst_107 [1] : vector<16x128xf32> to vector<16xf32>
    %317 = vector.shape_cast %316 : vector<16xf32> to vector<16x1xf32>
    %cst_108 = arith.constant 3.125000e-02 : f32
    %318 = vector.broadcast %cst_108 : f32 to vector<16x1xf32>
    %319 = arith.mulf %317, %318 : vector<16x1xf32>
    %320 = vector.broadcast %319 : vector<16x1xf32> to vector<16x128xf32>
    %321 = arith.subf %311, %320 : vector<16x128xf32>
    %322 = vector.broadcast %8 : vector<1x128xf32> to vector<16x128xf32>
    %323 = arith.mulf %321, %322 : vector<16x128xf32>
    %324 = arith.mulf %323, %323 : vector<16x128xf32>
    %cst_109 = arith.constant dense<0.000000e+00> : vector<16xf32>
    %325 = vector.multi_reduction <add>, %324, %cst_109 [1] : vector<16x128xf32> to vector<16xf32>
    %326 = vector.shape_cast %325 : vector<16xf32> to vector<16x1xf32>
    %cst_110 = arith.constant 3.125000e-02 : f32
    %327 = vector.broadcast %cst_110 : f32 to vector<16x1xf32>
    %328 = arith.mulf %326, %327 : vector<16x1xf32>
    %329 = vector.broadcast %319 : vector<16x1xf32> to vector<16x128xf32>
    %330 = arith.subf %311, %329 : vector<16x128xf32>
    %331 = vector.broadcast %312 : vector<1x128xf32> to vector<16x128xf32>
    %332 = arith.mulf %331, %330 : vector<16x128xf32>
    %cst_111 = arith.constant 9.99999974E-6 : f32
    %333 = vector.broadcast %cst_111 : f32 to vector<16x1xf32>
    %334 = arith.addf %328, %333 : vector<16x1xf32>
    %335 = math.rsqrt %334 : vector<16x1xf32>
    %336 = vector.broadcast %335 : vector<16x1xf32> to vector<16x128xf32>
    %337 = arith.mulf %332, %336 : vector<16x128xf32>
    %338 = vector.broadcast %313 : vector<1x128xf32> to vector<16x128xf32>
    %339 = arith.addf %337, %338 : vector<16x128xf32>
    %cst_112 = arith.constant 0.000000e+00 : f32
    %340 = vector.broadcast %cst_112 : f32 to vector<16x128xf32>
    %341 = arith.maximumf %339, %340 : vector<16x128xf32>
    %342 = arith.truncf %341 : vector<16x128xf32> to vector<16x128xbf16>
    %c896 = arith.constant 896 : index
    %c0_113 = arith.constant 0 : index
    %343 = vector.load %arg3[%c896, %c0_113] : memref<1024x128xbf16, #tpu.memory_space<vmem>>, vector<128x128xbf16>
    %cst_114 = arith.constant dense<0.000000e+00> : vector<16x128xf32>
    %344 = tpu.matmul %342, %343, %cst_114 {dimension_numbers = #tpu.dot_dimension_numbers<[1], [0], [0], [1], [0, 0, 1, 1], [], []>} : vector<16x128xbf16>, vector<128x128xbf16>, vector<16x128xf32> -> vector<16x128xf32>
    %c25 = arith.constant 25 : index
    %c0_115 = arith.constant 0 : index
    %345 = vector.load %arg4[%c25, %c0_115] : memref<32x128xf32, #tpu.memory_space<vmem>>, vector<1x128xf32>
    %346 = vector.broadcast %345 : vector<1x128xf32> to vector<16x128xf32>
    %347 = arith.addf %344, %346 : vector<16x128xf32>
    %c0_116 = arith.constant 0 : index
    %c0_117 = arith.constant 0 : index
    %c0_118 = arith.constant 0 : index
    %348 = vector.load %arg5[%c0_116, %c0_117, %c0_118] : memref<1x16x128xf32, #tpu.memory_space<vmem>>, vector<1x16x128xf32>
    %349 = vector.shape_cast %348 : vector<1x16x128xf32> to vector<16x128xf32>
    %350 = vector.shape_cast %347 : vector<16x128xf32> to vector<1x16x128xf32>
    tpu.vector_store %arg5[%c0_116, %c0_117, %c0_118], %350 {strides = array<i32>} : memref<1x16x128xf32, #tpu.memory_space<vmem>>, vector<1x16x128xf32>,
    return
  }
  func.func @transform_0(%arg0: i32) -> (i32, i32, i32) {
    %c0_i32 = arith.constant 0 : i32
    %c0_i32_0 = arith.constant 0 : i32
    %c0_i32_1 = arith.constant 0 : i32
    return %arg0, %c0_i32, %c0_i32_0 : i32, i32, i32
  }
  func.func @transform_1(%arg0: i32) -> (i32, i32, i32) {
    %c0_i32 = arith.constant 0 : i32
    %c0_i32_0 = arith.constant 0 : i32
    %c0_i32_1 = arith.constant 0 : i32
    return %arg0, %c0_i32, %c0_i32_0 : i32, i32, i32
  }
  func.func @transform_2(%arg0: i32) -> (i32, i32) {
    %c0_i32 = arith.constant 0 : i32
    %c0_i32_0 = arith.constant 0 : i32
    %c0_i32_1 = arith.constant 0 : i32
    return %c0_i32, %c0_i32_0 : i32, i32
  }
  func.func @transform_3(%arg0: i32) -> (i32, i32) {
    %c0_i32 = arith.constant 0 : i32
    %c0_i32_0 = arith.constant 0 : i32
    %c0_i32_1 = arith.constant 0 : i32
    return %c0_i32, %c0_i32_0 : i32, i32
  }
  func.func @transform_4(%arg0: i32) -> (i32, i32, i32) {
    %c0_i32 = arith.constant 0 : i32
    %c0_i32_0 = arith.constant 0 : i32
    %c0_i32_1 = arith.constant 0 : i32
    return %arg0, %c0_i32, %c0_i32_0 : i32, i32, i32
  }
}

</mosaic_0001>

<llo_original>
// kernel: hierarchical_graph_module.1
$region0: #{hierarchical_graph_module.1}
  #allocation0 [shape = 'u32[]', space=smem, size = 0x4, offset = 0x4, fixed_abs, tag = 'smem constant byte address 0x4 - core index']
  #allocation1 [shape = 'u32[144,128]{1,0:T(1,128)}', space=vmem, size = 0x12000, scoped, tag = 'internal scratch']
  %s0 = inlined_call_operand.vmem [shape: bf16[2,32,16], index: 0, kind: input, shape index: {}]
  %s1 = inlined_call_operand.vmem [shape: f32[2,16,128], index: 1, kind: input, shape index: {}]
  %s2 = inlined_call_operand.hbm [shape: bf16[1024,128], index: 2, kind: input, shape index: {}]
  %s3 = inlined_call_operand.hbm [shape: f32[32,128], index: 3, kind: input, shape index: {}]
  %s4 = inlined_call_operand.hbm [shape: f32[2,16,128], index: 4, kind: output, shape index: {}]
  %s5 = sld [smem:[#allocation0]]
  $region57: #{hierarchical_graph_module.1} parent=0
    _
  %s7 = ssub.s32 1, %s5
  %s8 = scalar_select 0, %s7, %s5
  $region1: #{hierarchical_graph_module.1} parent=0
    #allocation2 [shape = 'u8[262144]{0}', space=vmem, size = 0x40000, scoped, tag = 'input window, operand 2, single buffered']
    #allocation3 [shape = 's32[2]{0}', space=sflag, size = 0x8, scoped, tag = 'scoped memory for hierarchical_graph_module.1']
    #allocation4 [shape = 's32[2]{0}', space=sflag, size = 0x8, scoped, tag = 'scoped memory for hierarchical_graph_module.1']
    #allocation5 [shape = 'u8[16384]{0}', space=vmem, size = 0x4000, scoped, tag = 'input window, operand 3, single buffered']
    #allocation6 [shape = 's32[1]{0}', space=sflag, size = 0x4, scoped, tag = 'scoped memory for hierarchical_graph_module.1']
    #allocation7 [shape = 'u8[16384]{0}', space=vmem, size = 0x4000, scoped, tag = 'output window, operand 0']
    %9 = vsyncpa [#allocation3], 0
    %10 = vsyncpa [#allocation6], 0
    %11 = vsyncpa [#allocation4], 0
    %s12 = scalar_lea.sflag [#allocation4], 1
    %13 = vsyncpa %s12, 0
    loop: start=0, step=1, limit=4
    $region2: #{hierarchical_graph_module.1} parent=1 // loop_pre_header
      _
    $region3: #{hierarchical_graph_module.1} parent=1 // loop_header
      %s15 = sphi 0, %s19
      %p16 = scmp.ge.s32.totalorder %s15, 4
      %s25 = sphi 0, %s27
      %s28 = sphi 0, %s25
      %s29 = sphi 0, %s28
      %s45 = sphi 0, %s29
      %s51 = sphi 0, %s53
      %s54 = sphi 0, %s51
      %s55 = sphi 0, %s54
      %s71 = sphi 0, %s55
      %s75 = sphi 0, %s75
      %s77 = sphi 0, %s75
      %s78 = sphi 0, %s77
      %s92 = sphi 0, %s78
      %s96 = sphi 0, %s96
      %s98 = sphi 0, %s96
      %s99 = sphi 0, %s98
      %s113 = sphi 0, %s99
      %s119 = sphi 0, %s121
      %s122 = sphi 0, %s119
      %s123 = sphi 0, %s122
      %s139 = sphi 0, %s123
    $region4: #{hierarchical_graph_module.1} parent=1 // loop_header_branch
      %18 = sbr.rel (%p16) target = $region8
    $region5: #{hierarchical_graph_module.1} parent=1 // loop_body
      %s20 = ssub.s32 %s15, 1
      %s21 = ssub.s32 %s15, 2
      %s22 = sadd.s32 %s15, 1
      %s23 = ssub.s32 %s15, %s22
      %p24 = scmp.eq.s32.totalorder %s23, 0
      %s26 = sadd.s32 %s25, 1
      %s27 = scalar_select %p24, %s25, %s26
      %p30 = pneg %p24
      %p31 = scmp.eq.s32.totalorder %s15, 1
      %p32 = por %p30, %p31
      %p33 = scmp.ne.s32.totalorder %s25, %s28
      %p34 = scmp.eq.s32.totalorder %s15, 0
      %p35 = por %p33, %p34
      %p36 = scmp.ne.s32.totalorder %s25, %s28
      %p37 = scmp.eq.s32.totalorder %s20, 1
      %p38 = por %p36, %p37
      %p39 = scmp.ne.s32.totalorder %s28, %s29
      %p40 = scmp.eq.s32.totalorder %s20, 0
      %p41 = por %p39, %p40
      %p42 = scmp.ne.s32.totalorder %s28, %s29
      %p43 = scmp.eq.s32.totalorder %s21, 1
      %p44 = por %p42, %p43
      %p46 = scmp.ne.s32.totalorder %s29, %s45
      %p47 = scmp.eq.s32.totalorder %s21, 0
      %p48 = por %p46, %p47
      %s49 = ssub.s32 %s15, %s22
      %p50 = scmp.eq.s32.totalorder %s49, 0
      %s52 = sadd.s32 %s51, 1
      %s53 = scalar_select %p50, %s51, %s52
      %p56 = pneg %p50
      %p57 = scmp.eq.s32.totalorder %s15, 1
      %p58 = por %p56, %p57
      %p59 = scmp.ne.s32.totalorder %s51, %s54
      %p60 = scmp.eq.s32.totalorder %s15, 0
      %p61 = por %p59, %p60
      %p62 = scmp.ne.s32.totalorder %s51, %s54
      %p63 = scmp.eq.s32.totalorder %s20, 1
      %p64 = por %p62, %p63
      %p65 = scmp.ne.s32.totalorder %s54, %s55
      %p66 = scmp.eq.s32.totalorder %s20, 0
      %p67 = por %p65, %p66
      %p68 = scmp.ne.s32.totalorder %s54, %s55
      %p69 = scmp.eq.s32.totalorder %s21, 1
      %p70 = por %p68, %p69
      %p72 = scmp.ne.s32.totalorder %s55, %s71
      %p73 = scmp.eq.s32.totalorder %s21, 0
      %p74 = por %p72, %p73
      %s76 = sadd.s32 %s75, 1
      %p79 = scmp.eq.s32.totalorder %s15, 1
      %p80 = scmp.ne.s32.totalorder %s75, %s77
      %p81 = scmp.eq.s32.totalorder %s15, 0
      %p82 = por %p80, %p81
      %p83 = scmp.ne.s32.totalorder %s75, %s77
      %p84 = scmp.eq.s32.totalorder %s20, 1
      %p85 = por %p83, %p84
      %p86 = scmp.ne.s32.totalorder %s77, %s78
      %p87 = scmp.eq.s32.totalorder %s20, 0
      %p88 = por %p86, %p87
      %p89 = scmp.ne.s32.totalorder %s77, %s78
      %p90 = scmp.eq.s32.totalorder %s21, 1
      %p91 = por %p89, %p90
      %p93 = scmp.ne.s32.totalorder %s78, %s92
      %p94 = scmp.eq.s32.totalorder %s21, 0
      %p95 = por %p93, %p94
      %s97 = sadd.s32 %s96, 1
      %p100 = scmp.eq.s32.totalorder %s15, 1
      %p101 = scmp.ne.s32.totalorder %s96, %s98
      %p102 = scmp.eq.s32.totalorder %s15, 0
      %p103 = por %p101, %p102
      %p104 = scmp.ne.s32.totalorder %s96, %s98
      %p105 = scmp.eq.s32.totalorder %s20, 1
      %p106 = por %p104, %p105
      %p107 = scmp.ne.s32.totalorder %s98, %s99
      %p108 = scmp.eq.s32.totalorder %s20, 0
      %p109 = por %p107, %p108
      %p110 = scmp.ne.s32.totalorder %s98, %s99
      %p111 = scmp.eq.s32.totalorder %s21, 1
      %p112 = por %p110, %p111
      %p114 = scmp.ne.s32.totalorder %s99, %s113
      %p115 = scmp.eq.s32.totalorder %s21, 0
      %p116 = por %p114, %p115
      %s117 = ssub.s32 %s15, %s22
      %p118 = scmp.eq.s32.totalorder %s117, 0
      %s120 = sadd.s32 %s119, 1
      %s121 = scalar_select %p118, %s119, %s120
      %p124 = pneg %p118
      %p125 = scmp.eq.s32.totalorder %s15, 1
      %p126 = por %p124, %p125
      %p127 = scmp.ne.s32.totalorder %s119, %s122
      %p128 = scmp.eq.s32.totalorder %s15, 0
      %p129 = por %p127, %p128
      %p130 = scmp.ne.s32.totalorder %s119, %s122
      %p131 = scmp.eq.s32.totalorder %s20, 1
      %p132 = por %p130, %p131
      %p133 = scmp.ne.s32.totalorder %s122, %s123
      %p134 = scmp.eq.s32.totalorder %s20, 0
      %p135 = por %p133, %p134
      %p136 = scmp.ne.s32.totalorder %s122, %s123
      %p137 = scmp.eq.s32.totalorder %s21, 1
      %p138 = por %p136, %p137
      %p140 = scmp.ne.s32.totalorder %s123, %s139
      %p141 = scmp.eq.s32.totalorder %s21, 0
      %p142 = por %p140, %p141
      %p143 = scmp.le.s32.totalorder 1, %s15
      %p144 = scmp.lt.s32.totalorder %s15, 3
      %p145 = pnand %p143, %p144
      %p146 = pneg %p145
      // Predicated region
      $region9: #{hierarchical_graph_module.1} parent=5 // pred_check
        _
      $region10: #{hierarchical_graph_module.1} parent=5 // pred_check_branch
        %148 = sbr.rel (%p145) target = $region12
      $region11: #{hierarchical_graph_module.1} parent=5 // pred_region
        %s149 = ssub.s32 %s15, 1
        // Predicated region
        $region13: #{hierarchical_graph_module.1} parent=11 // pred_check
          %p150 = pneg %p88
        $region14: #{hierarchical_graph_module.1} parent=11 // pred_check_branch
          %152 = sbr.rel (%p150) target = $region16
        $region15: #{hierarchical_graph_module.1} parent=11 // pred_region
          %s154 = ssub.s32 8192, 8192
          %155 = vsyncadd [#allocation3], %s154
          %s156 = sshll.u32 [#allocation2], 4
          %s157 = int_to_ptr.vmem [resolvable:$true] %s156
          %162 = dma.hbm_to_vmem [thread:$0]  %s2, 8192, %s157, [#allocation3], 64, 64, 4
        $region16: #{hierarchical_graph_module.1} parent=11 // pred_fallthru
          _
        // Predicated region
        $region17: #{hierarchical_graph_module.1} parent=11 // pred_check
          %p163 = pneg %p109
        $region18: #{hierarchical_graph_module.1} parent=11 // pred_check_branch
          %165 = sbr.rel (%p163) target = $region20
        $region19: #{hierarchical_graph_module.1} parent=11 // pred_region
          %s167 = ssub.s32 512, 512
          %168 = vsyncadd [#allocation6], %s167
          %s169 = sshll.u32 [#allocation5], 4
          %s170 = int_to_ptr.vmem [resolvable:$true] %s169
          %175 = dma.hbm_to_vmem [thread:$0]  %s3, 512, %s170, [#allocation6], 128, 128, 8
        $region20: #{hierarchical_graph_module.1} parent=11 // pred_fallthru
          _
      $region12: #{hierarchical_graph_module.1} parent=5 // pred_fallthru
        _
      %p176 = scmp.lt.s32.totalorder %s15, 2
      // Predicated region
      $region21: #{hierarchical_graph_module.1} parent=5 // pred_check
        %p177 = pneg %p176
      $region22: #{hierarchical_graph_module.1} parent=5 // pred_check_branch
        %179 = sbr.rel (%p177) target = $region24
      $region23: #{hierarchical_graph_module.1} parent=5 // pred_region
        // Predicated region
        $region25: #{hierarchical_graph_module.1} parent=23 // pred_check
          %p180 = pneg %p35
        $region26: #{hierarchical_graph_module.1} parent=23 // pred_check_branch
          %182 = sbr.rel (%p180) target = $region28
        $region27: #{hierarchical_graph_module.1} parent=23 // pred_region
          %p183 = scmp.lt.s32.totalorder %s15, 1
          %s184 = scalar_select %p183, %s15, 1
          %s185 = smul.addr %s184, 4
          %s186 = smul.addr %s185, 4
          %s187 = scalar_lea.vmem %s0, %s186
        $region28: #{hierarchical_graph_module.1} parent=23 // pred_fallthru
          _
        // Predicated region
        $region29: #{hierarchical_graph_module.1} parent=23 // pred_check
          %p188 = pneg %p61
        $region30: #{hierarchical_graph_module.1} parent=23 // pred_check_branch
          %190 = sbr.rel (%p188) target = $region32
        $region31: #{hierarchical_graph_module.1} parent=23 // pred_region
          %p191 = scmp.lt.s32.totalorder %s15, 1
          %s192 = scalar_select %p191, %s15, 1
          %s193 = smul.addr %s192, 2
          %s194 = smul.addr %s193, 8
          %s195 = scalar_lea.vmem %s1, %s194
        $region32: #{hierarchical_graph_module.1} parent=23 // pred_fallthru
          _
      $region24: #{hierarchical_graph_module.1} parent=5 // pred_fallthru
        _
      %p196 = scmp.le.s32.totalorder 1, %s15
      %p197 = scmp.lt.s32.totalorder %s15, 3
      %p198 = pnand %p196, %p197
      %p199 = pneg %p198
      // Predicated region
      $region33: #{hierarchical_graph_module.1} parent=5 // pred_check
        _
      $region34: #{hierarchical_graph_module.1} parent=5 // pred_check_branch
        %201 = sbr.rel (%p198) target = $region36
      $region35: #{hierarchical_graph_module.1} parent=5 // pred_region
        %s202 = ssub.s32 %s15, 1
        // Predicated region
        $region37: #{hierarchical_graph_module.1} parent=35 // pred_check
          %p203 = pneg %p88
        $region38: #{hierarchical_graph_module.1} parent=35 // pred_check_branch
          %205 = sbr.rel (%p203) target = $region40
        $region39: #{hierarchical_graph_module.1} parent=35 // pred_region
          %206 = dma.done [#allocation3], 8192
        $region40: #{hierarchical_graph_module.1} parent=35 // pred_fallthru
          _
        // Predicated region
        $region41: #{hierarchical_graph_module.1} parent=35 // pred_check
          %p207 = pneg %p109
        $region42: #{hierarchical_graph_module.1} parent=35 // pred_check_branch
          %209 = sbr.rel (%p207) target = $region44
        $region43: #{hierarchical_graph_module.1} parent=35 // pred_region
          %210 = dma.done [#allocation6], 512
        $region44: #{hierarchical_graph_module.1} parent=35 // pred_fallthru
          _
        %p211 = scmp.lt.s32.totalorder %s20, 1
        %s212 = scalar_select %p211, %s20, 1
        %s213 = smul.addr %s212, 4
        %s214 = smul.addr %s213, 4
        %s215 = scalar_lea.vmem %s0, %s214
        %p216 = pneg %p41
        %p217 = pneg %p38
        %p218 = scmp.lt.s32.totalorder %s20, 1
        %s219 = scalar_select %p218, %s20, 1
        %s220 = smul.addr %s219, 2
        %s221 = smul.addr %s220, 8
        %s222 = scalar_lea.vmem %s1, %s221
        %p223 = pneg %p67
        %p224 = pneg %p64
        %p225 = pneg %p88
        %p226 = pneg %p85
        %p227 = pneg %p109
        %p228 = pneg %p106
        %p229 = pneg %p135
        %p230 = pneg %p132
        %s231 = sand.u32 %s122, 1
        %s232 = scalar_lea.sflag [#allocation4], %s231
        %s233 = sand.u32 %s122, 1
        %s234 = smul.addr %s233, 16
        %s235 = scalar_lea.vmem [#allocation7], %s234
        %p236 = scmp.lt.s32.totalorder %s20, 1
        %s237 = scalar_select %p236, %s20, 1
        %s238 = smul.addr %s237, 4
        %s239 = smul.addr %s238, 4
        %s240 = scalar_lea.vmem %s0, %s239
        %p241 = scmp.lt.s32.totalorder %s20, 1
        %s242 = scalar_select %p241, %s20, 1
        %s243 = smul.addr %s242, 2
        %s244 = smul.addr %s243, 8
        %s245 = scalar_lea.vmem %s1, %s244
        %v247 = vld [vmem:[%s240] sm:$0xf]
        %v248 = vld [vmem:[%s240 + $0x4] sm:$0xf]
        %v249 = vld [vmem:[%s240 + $0x8] sm:$0xf]
        %v250 = vld [vmem:[%s240 + $0xc] sm:$0xf]
        %v251 = vld [vmem:[%s245] sm:$0xff]
        %v252 = vld [vmem:[%s245 + $0x8] sm:$0xff]
        %v253 = vlaneseq
        %v254 = vand.u32 %v253, 127
        %vm255 = vcmp.lt.s32.totalorder %v254, 32
        %v256 = vsel %vm255, 1, 0
        %v257 = vcvt.s32.f32 %v256
        %v258 = vpack.c.bf16 %v252, %v251
        %v259 = vld [vmem:[#allocation2 + $0x80] sm:$0xf]
        %v260 = vld [vmem:[#allocation2 + $0x84] sm:$0xf]
        %v261 = vld [vmem:[#allocation2 + $0x88] sm:$0xf]
        %v262 = vld [vmem:[#allocation2 + $0x8c] sm:$0xf]
        %v263 = vld [vmem:[#allocation2 + $0x90] sm:$0xf]
        %v264 = vld [vmem:[#allocation2 + $0x94] sm:$0xf]
        %v265 = vld [vmem:[#allocation2 + $0x98] sm:$0xf]
        %v266 = vld [vmem:[#allocation2 + $0x9c] sm:$0xf]
        %v267 = vld [vmem:[#allocation2 + $0xa0] sm:$0xf]
        %v268 = vld [vmem:[#allocation2 + $0xa4] sm:$0xf]
        %v269 = vld [vmem:[#allocation2 + $0xa8] sm:$0xf]
        %v270 = vld [vmem:[#allocation2 + $0xac] sm:$0xf]
        %v271 = vld [vmem:[#allocation2 + $0xb0] sm:$0xf]
        %v272 = vld [vmem:[#allocation2 + $0xb4] sm:$0xf]
        %v273 = vld [vmem:[#allocation2 + $0xb8] sm:$0xf]
        %v274 = vld [vmem:[#allocation2 + $0xbc] sm:$0xf]
        %v275 = vld [vmem:[#allocation5 + $0x18] sm:$0x1]
        %v276 = vlaneseq
        %v277 = vshrl.u32 %v276, 7
        %v278 = vsub.s32 0, %v277
        %v279 = vrot.slane %v275, %v278
        %v296 = vunpack.c.l.b16 %v259
        %v297 = vunpack.c.l.b16 %v260
        %v298 = vunpack.c.l.b16 %v261
        %v299 = vunpack.c.l.b16 %v262
        %v300 = vunpack.c.l.b16 %v263
        %v301 = vunpack.c.l.b16 %v264
        %v302 = vunpack.c.l.b16 %v265
        %v303 = vunpack.c.l.b16 %v266
        %v304 = vunpack.c.l.b16 %v267
        %v305 = vunpack.c.l.b16 %v268
        %v306 = vunpack.c.l.b16 %v269
        %v307 = vunpack.c.l.b16 %v270
        %v308 = vunpack.c.l.b16 %v271
        %v309 = vunpack.c.l.b16 %v272
        %v310 = vunpack.c.l.b16 %v273
        %v311 = vunpack.c.l.b16 %v274
        %v312 = vpack.c.b16 %v297, %v296
        %v313 = vpack.c.b16 %v299, %v298
        %v314 = vpack.c.b16 %v301, %v300
        %v315 = vpack.c.b16 %v303, %v302
        %v316 = vpack.c.b16 %v305, %v304
        %v317 = vpack.c.b16 %v307, %v306
        %v318 = vpack.c.b16 %v309, %v308
        %v319 = vpack.c.b16 %v311, %v310
        %328 = vmatprep.subr.bf16.mxu0 0
        %329 = vmatpush1.bf16.msra.mxu0 %v319
        %330 = vmatprep.subr.bf16.mxu0 0
        %331 = vmatpush1.bf16.msra.mxu0 %v318
        %332 = vmatprep.subr.bf16.mxu0 0
        %333 = vmatpush1.bf16.msra.mxu0 %v317
        %334 = vmatprep.subr.bf16.mxu0 0
        %335 = vmatpush1.bf16.msra.mxu0 %v316
        %336 = vmatprep.subr.bf16.mxu0 0
        %337 = vmatpush1.bf16.msra.mxu0 %v315
        %338 = vmatprep.subr.bf16.mxu0 0
        %339 = vmatpush1.bf16.msra.mxu0 %v314
        %340 = vmatprep.subr.bf16.mxu0 0
        %341 = vmatpush1.bf16.msra.mxu0 %v313
        %342 = vmatprep.subr.bf16.mxu0 0
        %343 = vmatpush1.bf16.msra.mxu0 %v312
        %344 = vmatprep.subr.bf16.mxu0 0
        %345 = vmatpush2.bf16.msra.mxu0 0
        %346 = vmatprep.subr.bf16.mxu0 0
        %347 = vmatpush2.bf16.msra.mxu0 0
        %348 = vmatprep.subr.bf16.mxu0 0
        %349 = vmatpush2.bf16.msra.mxu0 0
        %350 = vmatprep.subr.bf16.mxu0 0
        %351 = vmatpush2.bf16.msra.mxu0 0
        %352 = vmatprep.subr.bf16.mxu0 0
        %353 = vmatpush2.bf16.msra.mxu0 0
        %354 = vmatprep.subr.bf16.mxu0 0
        %355 = vmatpush2.bf16.msra.mxu0 0
        %356 = vmatprep.subr.bf16.mxu0 0
        %357 = vmatpush2.bf16.msra.mxu0 0
        %358 = vmatprep.subr.bf16.mxu0 0
        %359 = vmatpush2.bf16.msra.mxu0 0
        %360 = vmatprep.mubr.bf16.mxu0 0
        %361 = vmatmul.mubr.bf16.gmra.mxu0 %v258
        %v362 = vpop.f32.mrf.mxu0
        %v363 = vadd.f32 %v279, %v362
        %v364 = vpop.f32.mrf.mxu0
        %v365 = vpop.f32.mrf.mxu0
        %v366 = vadd.f32 %v279, %v365
        %v367 = vpop.f32.mrf.mxu0
        %368 = vdwg.mxu0
        %v369 = vld [vmem:[#allocation5] sm:$0x1]
        %v374 = vunpack.c.l.b16 %v247
        %v375 = vunpack.c.l.b16 %v248
        %v376 = vunpack.c.l.b16 %v249
        %v377 = vunpack.c.l.b16 %v250
        %v378 = vpack.c.b16 %v375, %v374
        %v379 = vpack.c.b16 %v377, %v376
        %vm380 = vcmask 130048
        %v382 = vsel %vm380, %v378, 0
        %v385 = vsel %vm380, %v379, 0
        %387 = vmatprep.subr.bf16.mxu0 0
        %388 = vmatpush1.bf16.msra.mxu0 0
        %389 = vmatprep.subr.bf16.mxu0 0
        %390 = vmatpush1.bf16.msra.mxu0 0
        %391 = vmatprep.subr.bf16.mxu0 0
        %392 = vmatpush1.bf16.msra.mxu0 0
        %393 = vmatprep.subr.bf16.mxu0 0
        %394 = vmatpush1.bf16.msra.mxu0 0
        %395 = vmatprep.subr.bf16.mxu0 0
        %396 = vmatpush1.bf16.msra.mxu0 0
        %397 = vmatprep.subr.bf16.mxu0 0
        %398 = vmatpush1.bf16.msra.mxu0 0
        %399 = vmatprep.subr.bf16.mxu0 0
        %400 = vmatpush1.bf16.msra.mxu0 0
        %401 = vmatprep.subr.bf16.mxu0 0
        %402 = vmatpush1.bf16.msra.mxu0 %v258
        %403 = vmatprep.subr.bf16.mxu0 0
        %404 = vmatpush2.bf16.msra.mxu0 0
        %405 = vmatprep.subr.bf16.mxu0 0
        %406 = vmatpush2.bf16.msra.mxu0 0
        %407 = vmatprep.subr.bf16.mxu0 0
        %408 = vmatpush2.bf16.msra.mxu0 0
        %409 = vmatprep.subr.bf16.mxu0 0
        %410 = vmatpush2.bf16.msra.mxu0 0
        %411 = vmatprep.subr.bf16.mxu0 0
        %412 = vmatpush2.bf16.msra.mxu0 0
        %413 = vmatprep.subr.bf16.mxu0 0
        %414 = vmatpush2.bf16.msra.mxu0 0
        %415 = vmatprep.subr.bf16.mxu0 0
        %416 = vmatpush2.bf16.msra.mxu0 0
        %417 = vmatprep.subr.bf16.mxu0 0
        %418 = vmatpush2.bf16.msra.mxu0 0
        %419 = vmatprep.mubr.bf16.mxu0 0
        %420 = vmatmul.mubr.bf16.gmra.mxu0 %v382
        %v421 = vpop.f32.mrf.mxu0
        %v422 = vadd.f32 0.0, %v421
        %v423 = vpop.f32.mrf.mxu0
        %v424 = vpop.f32.mrf.mxu0
        %v425 = vadd.f32 0.0, %v424
        %v426 = vpop.f32.mrf.mxu0
        %427 = vmatprep.mubr.bf16.mxu0 0
        %428 = vmatmul.mubr.bf16.gmra.mxu0 %v385
        %v429 = vpop.f32.mrf.mxu0
        %v430 = vadd.f32 0.0, %v429
        %v431 = vpop.f32.mrf.mxu0
        %v432 = vpop.f32.mrf.mxu0
        %v433 = vadd.f32 0.0, %v432
        %v434 = vpop.f32.mrf.mxu0
        %435 = vdwg.mxu0
        %436 = vrot.lane.b32.xlu0 %v422, 32
        %v437 = vpop.permute.xlu0 %436
        %438 = vrot.lane.b32.xlu0 %v425, 32
        %v439 = vpop.permute.xlu0 %438
        %v440 = vadd.f32 %v251, %v437
        %v441 = vadd.f32 %v252, %v439
        %442 = vrot.lane.b32.xlu0 %v430, 64
        %v443 = vpop.permute.xlu0 %442
        %444 = vrot.lane.b32.xlu0 %v433, 64
        %v445 = vpop.permute.xlu0 %444
        %v446 = vadd.f32 %v440, %v443
        %v447 = vadd.f32 %v441, %v445
        %v448 = vpack.c.bf16 %v447, %v446
        %v449 = vld [vmem:[#allocation2] sm:$0xf]
        %v450 = vld [vmem:[#allocation2 + $0x4] sm:$0xf]
        %v451 = vld [vmem:[#allocation2 + $0x8] sm:$0xf]
        %v452 = vld [vmem:[#allocation2 + $0xc] sm:$0xf]
        %v453 = vld [vmem:[#allocation2 + $0x10] sm:$0xf]
        %v454 = vld [vmem:[#allocation2 + $0x14] sm:$0xf]
        %v455 = vld [vmem:[#allocation2 + $0x18] sm:$0xf]
        %v456 = vld [vmem:[#allocation2 + $0x1c] sm:$0xf]
        %v457 = vld [vmem:[#allocation2 + $0x20] sm:$0xf]
        %v458 = vld [vmem:[#allocation2 + $0x24] sm:$0xf]
        %v459 = vld [vmem:[#allocation2 + $0x28] sm:$0xf]
        %v460 = vld [vmem:[#allocation2 + $0x2c] sm:$0xf]
        %v461 = vld [vmem:[#allocation2 + $0x30] sm:$0xf]
        %v462 = vld [vmem:[#allocation2 + $0x34] sm:$0xf]
        %v463 = vld [vmem:[#allocation2 + $0x38] sm:$0xf]
        %v464 = vld [vmem:[#allocation2 + $0x3c] sm:$0xf]
        %v465 = vlaneseq
        %v466 = vshrl.u32 %v465, 7
        %v467 = vsub.s32 0, %v466
        %v468 = vrot.slane %v369, %v467
        %v485 = vunpack.c.l.b16 %v449
        %v486 = vunpack.c.l.b16 %v450
        %v487 = vunpack.c.l.b16 %v451
        %v488 = vunpack.c.l.b16 %v452
        %v489 = vunpack.c.l.b16 %v453
        %v490 = vunpack.c.l.b16 %v454
        %v491 = vunpack.c.l.b16 %v455
        %v492 = vunpack.c.l.b16 %v456
        %v493 = vunpack.c.l.b16 %v457
        %v494 = vunpack.c.l.b16 %v458
        %v495 = vunpack.c.l.b16 %v459
        %v496 = vunpack.c.l.b16 %v460
        %v497 = vunpack.c.l.b16 %v461
        %v498 = vunpack.c.l.b16 %v462
        %v499 = vunpack.c.l.b16 %v463
        %v500 = vunpack.c.l.b16 %v464
        %v501 = vpack.c.b16 %v486, %v485
        %v502 = vpack.c.b16 %v488, %v487
        %v503 = vpack.c.b16 %v490, %v489
        %v504 = vpack.c.b16 %v492, %v491
        %v505 = vpack.c.b16 %v494, %v493
        %v506 = vpack.c.b16 %v496, %v495
        %v507 = vpack.c.b16 %v498, %v497
        %v508 = vpack.c.b16 %v500, %v499
        %517 = vmatprep.subr.bf16.mxu0 0
        %518 = vmatpush1.bf16.msra.mxu0 %v508
        %519 = vmatprep.subr.bf16.mxu0 0
        %520 = vmatpush1.bf16.msra.mxu0 %v507
        %521 = vmatprep.subr.bf16.mxu0 0
        %522 = vmatpush1.bf16.msra.mxu0 %v506
        %523 = vmatprep.subr.bf16.mxu0 0
        %524 = vmatpush1.bf16.msra.mxu0 %v505
        %525 = vmatprep.subr.bf16.mxu0 0
        %526 = vmatpush1.bf16.msra.mxu0 %v504
        %527 = vmatprep.subr.bf16.mxu0 0
        %528 = vmatpush1.bf16.msra.mxu0 %v503
        %529 = vmatprep.subr.bf16.mxu0 0
        %530 = vmatpush1.bf16.msra.mxu0 %v502
        %531 = vmatprep.subr.bf16.mxu0 0
        %532 = vmatpush1.bf16.msra.mxu0 %v501
        %533 = vmatprep.subr.bf16.mxu0 0
        %534 = vmatpush2.bf16.msra.mxu0 0
        %535 = vmatprep.subr.bf16.mxu0 0
        %536 = vmatpush2.bf16.msra.mxu0 0
        %537 = vmatprep.subr.bf16.mxu0 0
        %538 = vmatpush2.bf16.msra.mxu0 0
        %539 = vmatprep.subr.bf16.mxu0 0
        %540 = vmatpush2.bf16.msra.mxu0 0
        %541 = vmatprep.subr.bf16.mxu0 0
        %542 = vmatpush2.bf16.msra.mxu0 0
        %543 = vmatprep.subr.bf16.mxu0 0
        %544 = vmatpush2.bf16.msra.mxu0 0
        %545 = vmatprep.subr.bf16.mxu0 0
        %546 = vmatpush2.bf16.msra.mxu0 0
        %547 = vmatprep.subr.bf16.mxu0 0
        %548 = vmatpush2.bf16.msra.mxu0 0
        %549 = vmatprep.mubr.bf16.mxu0 0
        %550 = vmatmul.mubr.bf16.gmra.mxu0 %v448
        %v551 = vpop.f32.mrf.mxu0
        %v552 = vadd.f32 %v468, %v551
        %v553 = vpop.f32.mrf.mxu0
        %v554 = vpop.f32.mrf.mxu0
        %v555 = vadd.f32 %v468, %v554
        %v556 = vpop.f32.mrf.mxu0
        %557 = vdwg.mxu0
        %v558 = vld [vmem:[#allocation5 + $0x1] sm:$0x1]
        %v559 = vld [vmem:[#allocation5 + $0x2] sm:$0x1]
        %v560 = vadd.f32 %v552, %v555
        %v561 = vrot.slane %v560, 4
        %v562 = vadd.f32 %v560, %v561
        %v563 = vrot.slane %v562, 2
        %v564 = vadd.f32 %v562, %v563
        %v565 = vrot.slane %v564, 1
        %v566 = vadd.f32 %v564, %v565
        %v567 = vrcp.pop 16.0
        %v568 = vmul.f32 %v566, %v567
        %v569 = vsub.f32 %v552, %v568
        %v570 = vsub.f32 %v555, %v568
        %v571 = vmul.f32 %v569, %v569
        %v572 = vmul.f32 %v570, %v570
        %v573 = vadd.f32 %v571, %v572
        %v574 = vrot.slane %v573, 4
        %v575 = vadd.f32 %v573, %v574
        %v576 = vrot.slane %v575, 2
        %v577 = vadd.f32 %v575, %v576
        %v578 = vrot.slane %v577, 1
        %v579 = vadd.f32 %v577, %v578
        %v580 = vmul.f32 %v579, %v567
        %v581 = vlaneseq
        %v582 = vshrl.u32 %v581, 7
        %v583 = vsub.s32 0, %v582
        %v584 = vrot.slane %v558, %v583
        %v585 = vmul.f32 %v584, %v569
        %v586 = vmul.f32 %v584, %v570
        %v587 = vadd.f32 %v580, 1e-05
        %v588 = vrsqrt.pop %v587
        %v589 = vmul.f32 %v585, %v588
        %v590 = vmul.f32 %v586, %v588
        %v591 = vlaneseq
        %v592 = vshrl.u32 %v591, 7
        %v593 = vsub.s32 0, %v592
        %v594 = vrot.slane %v559, %v593
        %v595 = vadd.f32 %v589, %v594
        %v596 = vadd.f32 %v590, %v594
        %v597 = vmax.f32 %v595, 0.0
        %v598 = vmax.f32 %v596, 0.0
        %v599 = vld [vmem:[#allocation5 + $0x3] sm:$0x1]
        %v600 = vpack.c.bf16 %v598, %v597
        %601 = vmatprep.subr.bf16.mxu0 0
        %602 = vmatpush1.bf16.msra.mxu0 0
        %603 = vmatprep.subr.bf16.mxu0 0
        %604 = vmatpush1.bf16.msra.mxu0 0
        %605 = vmatprep.subr.bf16.mxu0 0
        %606 = vmatpush1.bf16.msra.mxu0 0
        %607 = vmatprep.subr.bf16.mxu0 0
        %608 = vmatpush1.bf16.msra.mxu0 0
        %609 = vmatprep.subr.bf16.mxu0 0
        %610 = vmatpush1.bf16.msra.mxu0 0
        %611 = vmatprep.subr.bf16.mxu0 0
        %612 = vmatpush1.bf16.msra.mxu0 0
        %613 = vmatprep.subr.bf16.mxu0 0
        %614 = vmatpush1.bf16.msra.mxu0 0
        %615 = vmatprep.subr.bf16.mxu0 0
        %616 = vmatpush1.bf16.msra.mxu0 %v600
        %617 = vmatprep.subr.bf16.mxu0 0
        %618 = vmatpush2.bf16.msra.mxu0 0
        %619 = vmatprep.subr.bf16.mxu0 0
        %620 = vmatpush2.bf16.msra.mxu0 0
        %621 = vmatprep.subr.bf16.mxu0 0
        %622 = vmatpush2.bf16.msra.mxu0 0
        %623 = vmatprep.subr.bf16.mxu0 0
        %624 = vmatpush2.bf16.msra.mxu0 0
        %625 = vmatprep.subr.bf16.mxu0 0
        %626 = vmatpush2.bf16.msra.mxu0 0
        %627 = vmatprep.subr.bf16.mxu0 0
        %628 = vmatpush2.bf16.msra.mxu0 0
        %629 = vmatprep.subr.bf16.mxu0 0
        %630 = vmatpush2.bf16.msra.mxu0 0
        %631 = vmatprep.subr.bf16.mxu0 0
        %632 = vmatpush2.bf16.msra.mxu0 0
        %633 = vmatprep.mubr.bf16.mxu0 0
        %634 = vmatmul.mubr.bf16.gmra.mxu0 %v382
        %v635 = vpop.f32.mrf.mxu0
        %v636 = vadd.f32 0.0, %v635
        %v637 = vpop.f32.mrf.mxu0
        %v638 = vpop.f32.mrf.mxu0
        %v639 = vadd.f32 0.0, %v638
        %v640 = vpop.f32.mrf.mxu0
        %641 = vmatprep.mubr.bf16.mxu0 0
        %642 = vmatmul.mubr.bf16.gmra.mxu0 %v385
        %v643 = vpop.f32.mrf.mxu0
        %v644 = vadd.f32 0.0, %v643
        %v645 = vpop.f32.mrf.mxu0
        %v646 = vpop.f32.mrf.mxu0
        %v647 = vadd.f32 0.0, %v646
        %v648 = vpop.f32.mrf.mxu0
        %649 = vdwg.mxu0
        %650 = vrot.lane.b32.xlu0 %v636, 32
        %v651 = vpop.permute.xlu0 %650
        %652 = vrot.lane.b32.xlu0 %v639, 32
        %v653 = vpop.permute.xlu0 %652
        %v654 = vadd.f32 %v597, %v651
        %v655 = vadd.f32 %v598, %v653
        %656 = vrot.lane.b32.xlu0 %v644, 64
        %v657 = vpop.permute.xlu0 %656
        %658 = vrot.lane.b32.xlu0 %v647, 64
        %v659 = vpop.permute.xlu0 %658
        %v660 = vadd.f32 %v654, %v657
        %v661 = vadd.f32 %v655, %v659
        %v662 = vpack.c.bf16 %v661, %v660
        %v663 = vld [vmem:[#allocation2 + $0x40] sm:$0xf]
        %v664 = vld [vmem:[#allocation2 + $0x44] sm:$0xf]
        %v665 = vld [vmem:[#allocation2 + $0x48] sm:$0xf]
        %v666 = vld [vmem:[#allocation2 + $0x4c] sm:$0xf]
        %v667 = vld [vmem:[#allocation2 + $0x50] sm:$0xf]
        %v668 = vld [vmem:[#allocation2 + $0x54] sm:$0xf]
        %v669 = vld [vmem:[#allocation2 + $0x58] sm:$0xf]
        %v670 = vld [vmem:[#allocation2 + $0x5c] sm:$0xf]
        %v671 = vld [vmem:[#allocation2 + $0x60] sm:$0xf]
        %v672 = vld [vmem:[#allocation2 + $0x64] sm:$0xf]
        %v673 = vld [vmem:[#allocation2 + $0x68] sm:$0xf]
        %v674 = vld [vmem:[#allocation2 + $0x6c] sm:$0xf]
        %v675 = vld [vmem:[#allocation2 + $0x70] sm:$0xf]
        %v676 = vld [vmem:[#allocation2 + $0x74] sm:$0xf]
        %v677 = vld [vmem:[#allocation2 + $0x78] sm:$0xf]
        %v678 = vld [vmem:[#allocation2 + $0x7c] sm:$0xf]
        %v679 = vlaneseq
        %v680 = vshrl.u32 %v679, 7
        %v681 = vsub.s32 0, %v680
        %v682 = vrot.slane %v599, %v681
        %v699 = vunpack.c.l.b16 %v663
        %v700 = vunpack.c.l.b16 %v664
        %v701 = vunpack.c.l.b16 %v665
        %v702 = vunpack.c.l.b16 %v666
        %v703 = vunpack.c.l.b16 %v667
        %v704 = vunpack.c.l.b16 %v668
        %v705 = vunpack.c.l.b16 %v669
        %v706 = vunpack.c.l.b16 %v670
        %v707 = vunpack.c.l.b16 %v671
        %v708 = vunpack.c.l.b16 %v672
        %v709 = vunpack.c.l.b16 %v673
        %v710 = vunpack.c.l.b16 %v674
        %v711 = vunpack.c.l.b16 %v675
        %v712 = vunpack.c.l.b16 %v676
        %v713 = vunpack.c.l.b16 %v677
        %v714 = vunpack.c.l.b16 %v678
        %v715 = vpack.c.b16 %v700, %v699
        %v716 = vpack.c.b16 %v702, %v701
        %v717 = vpack.c.b16 %v704, %v703
        %v718 = vpack.c.b16 %v706, %v705
        %v719 = vpack.c.b16 %v708, %v707
        %v720 = vpack.c.b16 %v710, %v709
        %v721 = vpack.c.b16 %v712, %v711
        %v722 = vpack.c.b16 %v714, %v713
        %731 = vmatprep.subr.bf16.mxu0 0
        %732 = vmatpush1.bf16.msra.mxu0 %v722
        %733 = vmatprep.subr.bf16.mxu0 0
        %734 = vmatpush1.bf16.msra.mxu0 %v721
        %735 = vmatprep.subr.bf16.mxu0 0
        %736 = vmatpush1.bf16.msra.mxu0 %v720
        %737 = vmatprep.subr.bf16.mxu0 0
        %738 = vmatpush1.bf16.msra.mxu0 %v719
        %739 = vmatprep.subr.bf16.mxu0 0
        %740 = vmatpush1.bf16.msra.mxu0 %v718
        %741 = vmatprep.subr.bf16.mxu0 0
        %742 = vmatpush1.bf16.msra.mxu0 %v717
        %743 = vmatprep.subr.bf16.mxu0 0
        %744 = vmatpush1.bf16.msra.mxu0 %v716
        %745 = vmatprep.subr.bf16.mxu0 0
        %746 = vmatpush1.bf16.msra.mxu0 %v715
        %747 = vmatprep.subr.bf16.mxu0 0
        %748 = vmatpush2.bf16.msra.mxu0 0
        %749 = vmatprep.subr.bf16.mxu0 0
        %750 = vmatpush2.bf16.msra.mxu0 0
        %751 = vmatprep.subr.bf16.mxu0 0
        %752 = vmatpush2.bf16.msra.mxu0 0
        %753 = vmatprep.subr.bf16.mxu0 0
        %754 = vmatpush2.bf16.msra.mxu0 0
        %755 = vmatprep.subr.bf16.mxu0 0
        %756 = vmatpush2.bf16.msra.mxu0 0
        %757 = vmatprep.subr.bf16.mxu0 0
        %758 = vmatpush2.bf16.msra.mxu0 0
        %759 = vmatprep.subr.bf16.mxu0 0
        %760 = vmatpush2.bf16.msra.mxu0 0
        %761 = vmatprep.subr.bf16.mxu0 0
        %762 = vmatpush2.bf16.msra.mxu0 0
        %763 = vmatprep.mubr.bf16.mxu0 0
        %764 = vmatmul.mubr.bf16.gmra.mxu0 %v662
        %v765 = vpop.f32.mrf.mxu0
        %v766 = vadd.f32 %v682, %v765
        %v767 = vpop.f32.mrf.mxu0
        %v768 = vpop.f32.mrf.mxu0
        %v769 = vadd.f32 %v682, %v768
        %v770 = vpop.f32.mrf.mxu0
        %771 = vdwg.mxu0
        %v772 = vld [vmem:[#allocation5 + $0x4] sm:$0x1]
        %v773 = vld [vmem:[#allocation5 + $0x5] sm:$0x1]
        %v774 = vadd.f32 %v766, %v769
        %v775 = vrot.slane %v774, 4
        %v776 = vadd.f32 %v774, %v775
        %v777 = vrot.slane %v776, 2
        %v778 = vadd.f32 %v776, %v777
        %v779 = vrot.slane %v778, 1
        %v780 = vadd.f32 %v778, %v779
        %v781 = vmul.f32 %v780, %v567
        %v782 = vsub.f32 %v766, %v781
        %v783 = vsub.f32 %v769, %v781
        %v784 = vmul.f32 %v782, %v782
        %v785 = vmul.f32 %v783, %v783
        %v786 = vadd.f32 %v784, %v785
        %v787 = vrot.slane %v786, 4
        %v788 = vadd.f32 %v786, %v787
        %v789 = vrot.slane %v788, 2
        %v790 = vadd.f32 %v788, %v789
        %v791 = vrot.slane %v790, 1
        %v792 = vadd.f32 %v790, %v791
        %v793 = vmul.f32 %v792, %v567
        %v794 = vlaneseq
        %v795 = vshrl.u32 %v794, 7
        %v796 = vsub.s32 0, %v795
        %v797 = vrot.slane %v772, %v796
        %v798 = vmul.f32 %v797, %v782
        %v799 = vmul.f32 %v797, %v783
        %v800 = vadd.f32 %v793, 1e-05
        %v801 = vrsqrt.pop %v800
        %v802 = vmul.f32 %v798, %v801
        %v803 = vmul.f32 %v799, %v801
        %v804 = vlaneseq
        %v805 = vshrl.u32 %v804, 7
        %v806 = vsub.s32 0, %v805
        %v807 = vrot.slane %v773, %v806
        %v808 = vadd.f32 %v802, %v807
        %v809 = vadd.f32 %v803, %v807
        %v810 = vadd.f32 %v808, %v363
        %v811 = vadd.f32 %v809, %v366
        %v812 = vld [vmem:[#allocation5 + $0x6] sm:$0x1]
        %v813 = vld [vmem:[#allocation5 + $0x7] sm:$0x1]
        %v814 = vmul.f32 %v810, %v257
        %v815 = vmul.f32 %v811, %v257
        %816 = vadd.xlane.f32.xlu0 %v814
        %v817 = vpop.xlane.xlu0 %816
        %818 = vadd.xlane.f32.xlu0 %v815
        %v819 = vpop.xlane.xlu0 %818
        %v820 = vmul.f32 %v817, 0.03125
        %v821 = vmul.f32 %v819, 0.03125
        %v822 = vsub.f32 %v810, %v820
        %v823 = vsub.f32 %v811, %v821
        %v824 = vmul.f32 %v822, %v257
        %v825 = vmul.f32 %v823, %v257
        %v826 = vmul.f32 %v824, %v824
        %v827 = vmul.f32 %v825, %v825
        %828 = vadd.xlane.f32.xlu0 %v826
        %v829 = vpop.xlane.xlu0 %828
        %830 = vadd.xlane.f32.xlu0 %v827
        %v831 = vpop.xlane.xlu0 %830
        %v832 = vmul.f32 %v829, 0.03125
        %v833 = vmul.f32 %v831, 0.03125
        %v834 = vlaneseq
        %v835 = vshrl.u32 %v834, 7
        %v836 = vsub.s32 0, %v835
        %v837 = vrot.slane %v812, %v836
        %v838 = vmul.f32 %v837, %v822
        %v839 = vmul.f32 %v837, %v823
        %v840 = vadd.f32 %v832, 1e-05
        %v841 = vadd.f32 %v833, 1e-05
        %v842 = vrsqrt.pop %v840
        %v843 = vrsqrt.pop %v841
        %v844 = vmul.f32 %v838, %v842
        %v845 = vmul.f32 %v839, %v843
        %v846 = vlaneseq
        %v847 = vshrl.u32 %v846, 7
        %v848 = vsub.s32 0, %v847
        %v849 = vrot.slane %v813, %v848
        %v850 = vadd.f32 %v844, %v849
        %v851 = vadd.f32 %v845, %v849
        %v852 = vmax.f32 %v850, 0.0
        %v853 = vmax.f32 %v851, 0.0
        %v854 = vld [vmem:[#allocation5 + $0x8] sm:$0x1]
        %v855 = vpack.c.bf16 %v853, %v852
        %856 = vmatprep.subr.bf16.mxu0 0
        %857 = vmatpush1.bf16.msra.mxu0 0
        %858 = vmatprep.subr.bf16.mxu0 0
        %859 = vmatpush1.bf16.msra.mxu0 0
        %860 = vmatprep.subr.bf16.mxu0 0
        %861 = vmatpush1.bf16.msra.mxu0 0
        %862 = vmatprep.subr.bf16.mxu0 0
        %863 = vmatpush1.bf16.msra.mxu0 0
        %864 = vmatprep.subr.bf16.mxu0 0
        %865 = vmatpush1.bf16.msra.mxu0 0
        %866 = vmatprep.subr.bf16.mxu0 0
        %867 = vmatpush1.bf16.msra.mxu0 0
        %868 = vmatprep.subr.bf16.mxu0 0
        %869 = vmatpush1.bf16.msra.mxu0 0
        %870 = vmatprep.subr.bf16.mxu0 0
        %871 = vmatpush1.bf16.msra.mxu0 %v855
        %872 = vmatprep.subr.bf16.mxu0 0
        %873 = vmatpush2.bf16.msra.mxu0 0
        %874 = vmatprep.subr.bf16.mxu0 0
        %875 = vmatpush2.bf16.msra.mxu0 0
        %876 = vmatprep.subr.bf16.mxu0 0
        %877 = vmatpush2.bf16.msra.mxu0 0
        %878 = vmatprep.subr.bf16.mxu0 0
        %879 = vmatpush2.bf16.msra.mxu0 0
        %880 = vmatprep.subr.bf16.mxu0 0
        %881 = vmatpush2.bf16.msra.mxu0 0
        %882 = vmatprep.subr.bf16.mxu0 0
        %883 = vmatpush2.bf16.msra.mxu0 0
        %884 = vmatprep.subr.bf16.mxu0 0
        %885 = vmatpush2.bf16.msra.mxu0 0
        %886 = vmatprep.subr.bf16.mxu0 0
        %887 = vmatpush2.bf16.msra.mxu0 0
        %888 = vmatprep.mubr.bf16.mxu0 0
        %889 = vmatmul.mubr.bf16.gmra.mxu0 %v382
        %v890 = vpop.f32.mrf.mxu0
        %v891 = vadd.f32 0.0, %v890
        %v892 = vpop.f32.mrf.mxu0
        %v893 = vpop.f32.mrf.mxu0
        %v894 = vadd.f32 0.0, %v893
        %v895 = vpop.f32.mrf.mxu0
        %896 = vmatprep.mubr.bf16.mxu0 0
        %897 = vmatmul.mubr.bf16.gmra.mxu0 %v385
        %v898 = vpop.f32.mrf.mxu0
        %v899 = vadd.f32 0.0, %v898
        %v900 = vpop.f32.mrf.mxu0
        %v901 = vpop.f32.mrf.mxu0
        %v902 = vadd.f32 0.0, %v901
        %v903 = vpop.f32.mrf.mxu0
        %904 = vdwg.mxu0
        %905 = vrot.lane.b32.xlu0 %v891, 32
        %v906 = vpop.permute.xlu0 %905
        %907 = vrot.lane.b32.xlu0 %v894, 32
        %v908 = vpop.permute.xlu0 %907
        %v909 = vadd.f32 %v852, %v906
        %v910 = vadd.f32 %v853, %v908
        %911 = vrot.lane.b32.xlu0 %v899, 64
        %v912 = vpop.permute.xlu0 %911
        %913 = vrot.lane.b32.xlu0 %v902, 64
        %v914 = vpop.permute.xlu0 %913
        %v915 = vadd.f32 %v909, %v912
        %v916 = vadd.f32 %v910, %v914
        %v917 = vpack.c.bf16 %v916, %v915
        %v918 = vld [vmem:[#allocation2 + $0xc0] sm:$0xf]
        %v919 = vld [vmem:[#allocation2 + $0xc4] sm:$0xf]
        %v920 = vld [vmem:[#allocation2 + $0xc8] sm:$0xf]
        %v921 = vld [vmem:[#allocation2 + $0xcc] sm:$0xf]
        %v922 = vld [vmem:[#allocation2 + $0xd0] sm:$0xf]
        %v923 = vld [vmem:[#allocation2 + $0xd4] sm:$0xf]
        %v924 = vld [vmem:[#allocation2 + $0xd8] sm:$0xf]
        %v925 = vld [vmem:[#allocation2 + $0xdc] sm:$0xf]
        %v926 = vld [vmem:[#allocation2 + $0xe0] sm:$0xf]
        %v927 = vld [vmem:[#allocation2 + $0xe4] sm:$0xf]
        %v928 = vld [vmem:[#allocation2 + $0xe8] sm:$0xf]
        %v929 = vld [vmem:[#allocation2 + $0xec] sm:$0xf]
        %v930 = vld [vmem:[#allocation2 + $0xf0] sm:$0xf]
        %v931 = vld [vmem:[#allocation2 + $0xf4] sm:$0xf]
        %v932 = vld [vmem:[#allocation2 + $0xf8] sm:$0xf]
        %v933 = vld [vmem:[#allocation2 + $0xfc] sm:$0xf]
        %v934 = vlaneseq
        %v935 = vshrl.u32 %v934, 7
        %v936 = vsub.s32 0, %v935
        %v937 = vrot.slane %v854, %v936
        %v954 = vunpack.c.l.b16 %v918
        %v955 = vunpack.c.l.b16 %v919
        %v956 = vunpack.c.l.b16 %v920
        %v957 = vunpack.c.l.b16 %v921
        %v958 = vunpack.c.l.b16 %v922
        %v959 = vunpack.c.l.b16 %v923
        %v960 = vunpack.c.l.b16 %v924
        %v961 = vunpack.c.l.b16 %v925
        %v962 = vunpack.c.l.b16 %v926
        %v963 = vunpack.c.l.b16 %v927
        %v964 = vunpack.c.l.b16 %v928
        %v965 = vunpack.c.l.b16 %v929
        %v966 = vunpack.c.l.b16 %v930
        %v967 = vunpack.c.l.b16 %v931
        %v968 = vunpack.c.l.b16 %v932
        %v969 = vunpack.c.l.b16 %v933
        %v970 = vpack.c.b16 %v955, %v954
        %v971 = vpack.c.b16 %v957, %v956
        %v972 = vpack.c.b16 %v959, %v958
        %v973 = vpack.c.b16 %v961, %v960
        %v974 = vpack.c.b16 %v963, %v962
        %v975 = vpack.c.b16 %v965, %v964
        %v976 = vpack.c.b16 %v967, %v966
        %v977 = vpack.c.b16 %v969, %v968
        %986 = vmatprep.subr.bf16.mxu0 0
        %987 = vmatpush1.bf16.msra.mxu0 %v977
        %988 = vmatprep.subr.bf16.mxu0 0
        %989 = vmatpush1.bf16.msra.mxu0 %v976
        %990 = vmatprep.subr.bf16.mxu0 0
        %991 = vmatpush1.bf16.msra.mxu0 %v975
        %992 = vmatprep.subr.bf16.mxu0 0
        %993 = vmatpush1.bf16.msra.mxu0 %v974
        %994 = vmatprep.subr.bf16.mxu0 0
        %995 = vmatpush1.bf16.msra.mxu0 %v973
        %996 = vmatprep.subr.bf16.mxu0 0
        %997 = vmatpush1.bf16.msra.mxu0 %v972
        %998 = vmatprep.subr.bf16.mxu0 0
        %999 = vmatpush1.bf16.msra.mxu0 %v971
        %1000 = vmatprep.subr.bf16.mxu0 0
        %1001 = vmatpush1.bf16.msra.mxu0 %v970
        %1002 = vmatprep.subr.bf16.mxu0 0
        %1003 = vmatpush2.bf16.msra.mxu0 0
        %1004 = vmatprep.subr.bf16.mxu0 0
        %1005 = vmatpush2.bf16.msra.mxu0 0
        %1006 = vmatprep.subr.bf16.mxu0 0
        %1007 = vmatpush2.bf16.msra.mxu0 0
        %1008 = vmatprep.subr.bf16.mxu0 0
        %1009 = vmatpush2.bf16.msra.mxu0 0
        %1010 = vmatprep.subr.bf16.mxu0 0
        %1011 = vmatpush2.bf16.msra.mxu0 0
        %1012 = vmatprep.subr.bf16.mxu0 0
        %1013 = vmatpush2.bf16.msra.mxu0 0
        %1014 = vmatprep.subr.bf16.mxu0 0
        %1015 = vmatpush2.bf16.msra.mxu0 0
        %1016 = vmatprep.subr.bf16.mxu0 0
        %1017 = vmatpush2.bf16.msra.mxu0 0
        %1018 = vmatprep.mubr.bf16.mxu0 0
        %1019 = vmatmul.mubr.bf16.gmra.mxu0 %v917
        %v1020 = vpop.f32.mrf.mxu0
        %v1021 = vadd.f32 %v937, %v1020
        %v1022 = vpop.f32.mrf.mxu0
        %v1023 = vpop.f32.mrf.mxu0
        %v1024 = vadd.f32 %v937, %v1023
        %v1025 = vpop.f32.mrf.mxu0
        %1026 = vdwg.mxu0
        %v1027 = vld [vmem:[#allocation5 + $0x9] sm:$0x1]
        %v1028 = vld [vmem:[#allocation5 + $0xa] sm:$0x1]
        %v1029 = vadd.f32 %v1021, %v1024
        %v1030 = vrot.slane %v1029, 4
        %v1031 = vadd.f32 %v1029, %v1030
        %v1032 = vrot.slane %v1031, 2
        %v1033 = vadd.f32 %v1031, %v1032
        %v1034 = vrot.slane %v1033, 1
        %v1035 = vadd.f32 %v1033, %v1034
        %v1036 = vmul.f32 %v1035, %v567
        %v1037 = vsub.f32 %v1021, %v1036
        %v1038 = vsub.f32 %v1024, %v1036
        %v1039 = vmul.f32 %v1037, %v1037
        %v1040 = vmul.f32 %v1038, %v1038
        %v1041 = vadd.f32 %v1039, %v1040
        %v1042 = vrot.slane %v1041, 4
        %v1043 = vadd.f32 %v1041, %v1042
        %v1044 = vrot.slane %v1043, 2
        %v1045 = vadd.f32 %v1043, %v1044
        %v1046 = vrot.slane %v1045, 1
        %v1047 = vadd.f32 %v1045, %v1046
        %v1048 = vmul.f32 %v1047, %v567
        %v1049 = vlaneseq
        %v1050 = vshrl.u32 %v1049, 7
        %v1051 = vsub.s32 0, %v1050
        %v1052 = vrot.slane %v1027, %v1051
        %v1053 = vmul.f32 %v1052, %v1037
        %v1054 = vmul.f32 %v1052, %v1038
        %v1055 = vadd.f32 %v1048, 1e-05
        %v1056 = vrsqrt.pop %v1055
        %v1057 = vmul.f32 %v1053, %v1056
        %v1058 = vmul.f32 %v1054, %v1056
        %v1059 = vlaneseq
        %v1060 = vshrl.u32 %v1059, 7
        %v1061 = vsub.s32 0, %v1060
        %v1062 = vrot.slane %v1028, %v1061
        %v1063 = vadd.f32 %v1057, %v1062
        %v1064 = vadd.f32 %v1058, %v1062
        %v1065 = vmax.f32 %v1063, 0.0
        %v1066 = vmax.f32 %v1064, 0.0
        %v1067 = vld [vmem:[#allocation5 + $0xb] sm:$0x1]
        %v1068 = vpack.c.bf16 %v1066, %v1065
        %1069 = vmatprep.subr.bf16.mxu0 0
        %1070 = vmatpush1.bf16.msra.mxu0 0
        %1071 = vmatprep.subr.bf16.mxu0 0
        %1072 = vmatpush1.bf16.msra.mxu0 0
        %1073 = vmatprep.subr.bf16.mxu0 0
        %1074 = vmatpush1.bf16.msra.mxu0 0
        %1075 = vmatprep.subr.bf16.mxu0 0
        %1076 = vmatpush1.bf16.msra.mxu0 0
        %1077 = vmatprep.subr.bf16.mxu0 0
        %1078 = vmatpush1.bf16.msra.mxu0 0
        %1079 = vmatprep.subr.bf16.mxu0 0
        %1080 = vmatpush1.bf16.msra.mxu0 0
        %1081 = vmatprep.subr.bf16.mxu0 0
        %1082 = vmatpush1.bf16.msra.mxu0 0
        %1083 = vmatprep.subr.bf16.mxu0 0
        %1084 = vmatpush1.bf16.msra.mxu0 %v1068
        %1085 = vmatprep.subr.bf16.mxu0 0
        %1086 = vmatpush2.bf16.msra.mxu0 0
        %1087 = vmatprep.subr.bf16.mxu0 0
        %1088 = vmatpush2.bf16.msra.mxu0 0
        %1089 = vmatprep.subr.bf16.mxu0 0
        %1090 = vmatpush2.bf16.msra.mxu0 0
        %1091 = vmatprep.subr.bf16.mxu0 0
        %1092 = vmatpush2.bf16.msra.mxu0 0
        %1093 = vmatprep.subr.bf16.mxu0 0
        %1094 = vmatpush2.bf16.msra.mxu0 0
        %1095 = vmatprep.subr.bf16.mxu0 0
        %1096 = vmatpush2.bf16.msra.mxu0 0
        %1097 = vmatprep.subr.bf16.mxu0 0
        %1098 = vmatpush2.bf16.msra.mxu0 0
        %1099 = vmatprep.subr.bf16.mxu0 0
        %1100 = vmatpush2.bf16.msra.mxu0 0
        %1101 = vmatprep.mubr.bf16.mxu0 0
        %1102 = vmatmul.mubr.bf16.gmra.mxu0 %v382
        %v1103 = vpop.f32.mrf.mxu0
        %v1104 = vadd.f32 0.0, %v1103
        %v1105 = vpop.f32.mrf.mxu0
        %v1106 = vpop.f32.mrf.mxu0
        %v1107 = vadd.f32 0.0, %v1106
        %v1108 = vpop.f32.mrf.mxu0
        %1109 = vmatprep.mubr.bf16.mxu0 0
        %1110 = vmatmul.mubr.bf16.gmra.mxu0 %v385
        %v1111 = vpop.f32.mrf.mxu0
        %v1112 = vadd.f32 0.0, %v1111
        %v1113 = vpop.f32.mrf.mxu0
        %v1114 = vpop.f32.mrf.mxu0
        %v1115 = vadd.f32 0.0, %v1114
        %v1116 = vpop.f32.mrf.mxu0
        %1117 = vdwg.mxu0
        %1118 = vrot.lane.b32.xlu0 %v1104, 32
        %v1119 = vpop.permute.xlu0 %1118
        %1120 = vrot.lane.b32.xlu0 %v1107, 32
        %v1121 = vpop.permute.xlu0 %1120
        %v1122 = vadd.f32 %v1065, %v1119
        %v1123 = vadd.f32 %v1066, %v1121
        %1124 = vrot.lane.b32.xlu0 %v1112, 64
        %v1125 = vpop.permute.xlu0 %1124
        %1126 = vrot.lane.b32.xlu0 %v1115, 64
        %v1127 = vpop.permute.xlu0 %1126
        %v1128 = vadd.f32 %v1122, %v1125
        %v1129 = vadd.f32 %v1123, %v1127
        %v1130 = vpack.c.bf16 %v1129, %v1128
        %v1131 = vld [vmem:[#allocation2 + $0x100] sm:$0xf]
        %v1132 = vld [vmem:[#allocation2 + $0x104] sm:$0xf]
        %v1133 = vld [vmem:[#allocation2 + $0x108] sm:$0xf]
        %v1134 = vld [vmem:[#allocation2 + $0x10c] sm:$0xf]
        %v1135 = vld [vmem:[#allocation2 + $0x110] sm:$0xf]
        %v1136 = vld [vmem:[#allocation2 + $0x114] sm:$0xf]
        %v1137 = vld [vmem:[#allocation2 + $0x118] sm:$0xf]
        %v1138 = vld [vmem:[#allocation2 + $0x11c] sm:$0xf]
        %v1139 = vld [vmem:[#allocation2 + $0x120] sm:$0xf]
        %v1140 = vld [vmem:[#allocation2 + $0x124] sm:$0xf]
        %v1141 = vld [vmem:[#allocation2 + $0x128] sm:$0xf]
        %v1142 = vld [vmem:[#allocation2 + $0x12c] sm:$0xf]
        %v1143 = vld [vmem:[#allocation2 + $0x130] sm:$0xf]
        %v1144 = vld [vmem:[#allocation2 + $0x134] sm:$0xf]
        %v1145 = vld [vmem:[#allocation2 + $0x138] sm:$0xf]
        %v1146 = vld [vmem:[#allocation2 + $0x13c] sm:$0xf]
        %v1147 = vlaneseq
        %v1148 = vshrl.u32 %v1147, 7
        %v1149 = vsub.s32 0, %v1148
        %v1150 = vrot.slane %v1067, %v1149
        %v1167 = vunpack.c.l.b16 %v1131
        %v1168 = vunpack.c.l.b16 %v1132
        %v1169 = vunpack.c.l.b16 %v1133
        %v1170 = vunpack.c.l.b16 %v1134
        %v1171 = vunpack.c.l.b16 %v1135
        %v1172 = vunpack.c.l.b16 %v1136
        %v1173 = vunpack.c.l.b16 %v1137
        %v1174 = vunpack.c.l.b16 %v1138
        %v1175 = vunpack.c.l.b16 %v1139
        %v1176 = vunpack.c.l.b16 %v1140
        %v1177 = vunpack.c.l.b16 %v1141
        %v1178 = vunpack.c.l.b16 %v1142
        %v1179 = vunpack.c.l.b16 %v1143
        %v1180 = vunpack.c.l.b16 %v1144
        %v1181 = vunpack.c.l.b16 %v1145
        %v1182 = vunpack.c.l.b16 %v1146
        %v1183 = vpack.c.b16 %v1168, %v1167
        %v1184 = vpack.c.b16 %v1170, %v1169
        %v1185 = vpack.c.b16 %v1172, %v1171
        %v1186 = vpack.c.b16 %v1174, %v1173
        %v1187 = vpack.c.b16 %v1176, %v1175
        %v1188 = vpack.c.b16 %v1178, %v1177
        %v1189 = vpack.c.b16 %v1180, %v1179
        %v1190 = vpack.c.b16 %v1182, %v1181
        %1199 = vmatprep.subr.bf16.mxu0 0
        %1200 = vmatpush1.bf16.msra.mxu0 %v1190
        %1201 = vmatprep.subr.bf16.mxu0 0
        %1202 = vmatpush1.bf16.msra.mxu0 %v1189
        %1203 = vmatprep.subr.bf16.mxu0 0
        %1204 = vmatpush1.bf16.msra.mxu0 %v1188
        %1205 = vmatprep.subr.bf16.mxu0 0
        %1206 = vmatpush1.bf16.msra.mxu0 %v1187
        %1207 = vmatprep.subr.bf16.mxu0 0
        %1208 = vmatpush1.bf16.msra.mxu0 %v1186
        %1209 = vmatprep.subr.bf16.mxu0 0
        %1210 = vmatpush1.bf16.msra.mxu0 %v1185
        %1211 = vmatprep.subr.bf16.mxu0 0
        %1212 = vmatpush1.bf16.msra.mxu0 %v1184
        %1213 = vmatprep.subr.bf16.mxu0 0
        %1214 = vmatpush1.bf16.msra.mxu0 %v1183
        %1215 = vmatprep.subr.bf16.mxu0 0
        %1216 = vmatpush2.bf16.msra.mxu0 0
        %1217 = vmatprep.subr.bf16.mxu0 0
        %1218 = vmatpush2.bf16.msra.mxu0 0
        %1219 = vmatprep.subr.bf16.mxu0 0
        %1220 = vmatpush2.bf16.msra.mxu0 0
        %1221 = vmatprep.subr.bf16.mxu0 0
        %1222 = vmatpush2.bf16.msra.mxu0 0
        %1223 = vmatprep.subr.bf16.mxu0 0
        %1224 = vmatpush2.bf16.msra.mxu0 0
        %1225 = vmatprep.subr.bf16.mxu0 0
        %1226 = vmatpush2.bf16.msra.mxu0 0
        %1227 = vmatprep.subr.bf16.mxu0 0
        %1228 = vmatpush2.bf16.msra.mxu0 0
        %1229 = vmatprep.subr.bf16.mxu0 0
        %1230 = vmatpush2.bf16.msra.mxu0 0
        %1231 = vmatprep.mubr.bf16.mxu0 0
        %1232 = vmatmul.mubr.bf16.gmra.mxu0 %v1130
        %v1233 = vpop.f32.mrf.mxu0
        %v1234 = vadd.f32 %v1150, %v1233
        %v1235 = vpop.f32.mrf.mxu0
        %v1236 = vpop.f32.mrf.mxu0
        %v1237 = vadd.f32 %v1150, %v1236
        %v1238 = vpop.f32.mrf.mxu0
        %1239 = vdwg.mxu0
        %v1240 = vld [vmem:[#allocation5 + $0xc] sm:$0x1]
        %v1241 = vld [vmem:[#allocation5 + $0xd] sm:$0x1]
        %v1242 = vadd.f32 %v1234, %v1237
        %v1243 = vrot.slane %v1242, 4
        %v1244 = vadd.f32 %v1242, %v1243
        %v1245 = vrot.slane %v1244, 2
        %v1246 = vadd.f32 %v1244, %v1245
        %v1247 = vrot.slane %v1246, 1
        %v1248 = vadd.f32 %v1246, %v1247
        %v1249 = vmul.f32 %v1248, %v567
        %v1250 = vsub.f32 %v1234, %v1249
        %v1251 = vsub.f32 %v1237, %v1249
        %v1252 = vmul.f32 %v1250, %v1250
        %v1253 = vmul.f32 %v1251, %v1251
        %v1254 = vadd.f32 %v1252, %v1253
        %v1255 = vrot.slane %v1254, 4
        %v1256 = vadd.f32 %v1254, %v1255
        %v1257 = vrot.slane %v1256, 2
        %v1258 = vadd.f32 %v1256, %v1257
        %v1259 = vrot.slane %v1258, 1
        %v1260 = vadd.f32 %v1258, %v1259
        %v1261 = vmul.f32 %v1260, %v567
        %v1262 = vlaneseq
        %v1263 = vshrl.u32 %v1262, 7
        %v1264 = vsub.s32 0, %v1263
        %v1265 = vrot.slane %v1240, %v1264
        %v1266 = vmul.f32 %v1265, %v1250
        %v1267 = vmul.f32 %v1265, %v1251
        %v1268 = vadd.f32 %v1261, 1e-05
        %v1269 = vrsqrt.pop %v1268
        %v1270 = vmul.f32 %v1266, %v1269
        %v1271 = vmul.f32 %v1267, %v1269
        %v1272 = vlaneseq
        %v1273 = vshrl.u32 %v1272, 7
        %v1274 = vsub.s32 0, %v1273
        %v1275 = vrot.slane %v1241, %v1274
        %v1276 = vadd.f32 %v1270, %v1275
        %v1277 = vadd.f32 %v1271, %v1275
        %v1278 = vadd.f32 %v1276, %v852
        %v1279 = vadd.f32 %v1277, %v853
        %v1280 = vld [vmem:[#allocation5 + $0xe] sm:$0x1]
        %v1281 = vld [vmem:[#allocation5 + $0xf] sm:$0x1]
        %v1282 = vmul.f32 %v1278, %v257
        %v1283 = vmul.f32 %v1279, %v257
        %1284 = vadd.xlane.f32.xlu0 %v1282
        %v1285 = vpop.xlane.xlu0 %1284
        %1286 = vadd.xlane.f32.xlu0 %v1283
        %v1287 = vpop.xlane.xlu0 %1286
        %v1288 = vmul.f32 %v1285, 0.03125
        %v1289 = vmul.f32 %v1287, 0.03125
        %v1290 = vsub.f32 %v1278, %v1288
        %v1291 = vsub.f32 %v1279, %v1289
        %v1292 = vmul.f32 %v1290, %v257
        %v1293 = vmul.f32 %v1291, %v257
        %v1294 = vmul.f32 %v1292, %v1292
        %v1295 = vmul.f32 %v1293, %v1293
        %1296 = vadd.xlane.f32.xlu0 %v1294
        %v1297 = vpop.xlane.xlu0 %1296
        %1298 = vadd.xlane.f32.xlu0 %v1295
        %v1299 = vpop.xlane.xlu0 %1298
        %v1300 = vmul.f32 %v1297, 0.03125
        %v1301 = vmul.f32 %v1299, 0.03125
        %v1302 = vlaneseq
        %v1303 = vshrl.u32 %v1302, 7
        %v1304 = vsub.s32 0, %v1303
        %v1305 = vrot.slane %v1280, %v1304
        %v1306 = vmul.f32 %v1305, %v1290
        %v1307 = vmul.f32 %v1305, %v1291
        %v1308 = vadd.f32 %v1300, 1e-05
        %v1309 = vadd.f32 %v1301, 1e-05
        %v1310 = vrsqrt.pop %v1308
        %v1311 = vrsqrt.pop %v1309
        %v1312 = vmul.f32 %v1306, %v1310
        %v1313 = vmul.f32 %v1307, %v1311
        %v1314 = vlaneseq
        %v1315 = vshrl.u32 %v1314, 7
        %v1316 = vsub.s32 0, %v1315
        %v1317 = vrot.slane %v1281, %v1316
        %v1318 = vadd.f32 %v1312, %v1317
        %v1319 = vadd.f32 %v1313, %v1317
        %v1320 = vmax.f32 %v1318, 0.0
        %v1321 = vmax.f32 %v1319, 0.0
        %v1322 = vld [vmem:[#allocation5 + $0x10] sm:$0x1]
        %v1323 = vpack.c.bf16 %v1321, %v1320
        %1324 = vmatprep.subr.bf16.mxu0 0
        %1325 = vmatpush1.bf16.msra.mxu0 0
        %1326 = vmatprep.subr.bf16.mxu0 0
        %1327 = vmatpush1.bf16.msra.mxu0 0
        %1328 = vmatprep.subr.bf16.mxu0 0
        %1329 = vmatpush1.bf16.msra.mxu0 0
        %1330 = vmatprep.subr.bf16.mxu0 0
        %1331 = vmatpush1.bf16.msra.mxu0 0
        %1332 = vmatprep.subr.bf16.mxu0 0
        %1333 = vmatpush1.bf16.msra.mxu0 0
        %1334 = vmatprep.subr.bf16.mxu0 0
        %1335 = vmatpush1.bf16.msra.mxu0 0
        %1336 = vmatprep.subr.bf16.mxu0 0
        %1337 = vmatpush1.bf16.msra.mxu0 0
        %1338 = vmatprep.subr.bf16.mxu0 0
        %1339 = vmatpush1.bf16.msra.mxu0 %v1323
        %1340 = vmatprep.subr.bf16.mxu0 0
        %1341 = vmatpush2.bf16.msra.mxu0 0
        %1342 = vmatprep.subr.bf16.mxu0 0
        %1343 = vmatpush2.bf16.msra.mxu0 0
        %1344 = vmatprep.subr.bf16.mxu0 0
        %1345 = vmatpush2.bf16.msra.mxu0 0
        %1346 = vmatprep.subr.bf16.mxu0 0
        %1347 = vmatpush2.bf16.msra.mxu0 0
        %1348 = vmatprep.subr.bf16.mxu0 0
        %1349 = vmatpush2.bf16.msra.mxu0 0
        %1350 = vmatprep.subr.bf16.mxu0 0
        %1351 = vmatpush2.bf16.msra.mxu0 0
        %1352 = vmatprep.subr.bf16.mxu0 0
        %1353 = vmatpush2.bf16.msra.mxu0 0
        %1354 = vmatprep.subr.bf16.mxu0 0
        %1355 = vmatpush2.bf16.msra.mxu0 0
        %1356 = vmatprep.mubr.bf16.mxu0 0
        %1357 = vmatmul.mubr.bf16.gmra.mxu0 %v382
        %v1358 = vpop.f32.mrf.mxu0
        %v1359 = vadd.f32 0.0, %v1358
        %v1360 = vpop.f32.mrf.mxu0
        %v1361 = vpop.f32.mrf.mxu0
        %v1362 = vadd.f32 0.0, %v1361
        %v1363 = vpop.f32.mrf.mxu0
        %1364 = vmatprep.mubr.bf16.mxu0 0
        %1365 = vmatmul.mubr.bf16.gmra.mxu0 %v385
        %v1366 = vpop.f32.mrf.mxu0
        %v1367 = vadd.f32 0.0, %v1366
        %v1368 = vpop.f32.mrf.mxu0
        %v1369 = vpop.f32.mrf.mxu0
        %v1370 = vadd.f32 0.0, %v1369
        %v1371 = vpop.f32.mrf.mxu0
        %1372 = vdwg.mxu0
        %1373 = vrot.lane.b32.xlu0 %v1359, 32
        %v1374 = vpop.permute.xlu0 %1373
        %1375 = vrot.lane.b32.xlu0 %v1362, 32
        %v1376 = vpop.permute.xlu0 %1375
        %v1377 = vadd.f32 %v1320, %v1374
        %v1378 = vadd.f32 %v1321, %v1376
        %1379 = vrot.lane.b32.xlu0 %v1367, 64
        %v1380 = vpop.permute.xlu0 %1379
        %1381 = vrot.lane.b32.xlu0 %v1370, 64
        %v1382 = vpop.permute.xlu0 %1381
        %v1383 = vadd.f32 %v1377, %v1380
        %v1384 = vadd.f32 %v1378, %v1382
        %v1385 = vpack.c.bf16 %v1384, %v1383
        %v1386 = vld [vmem:[#allocation2 + $0x140] sm:$0xf]
        %v1387 = vld [vmem:[#allocation2 + $0x144] sm:$0xf]
        %v1388 = vld [vmem:[#allocation2 + $0x148] sm:$0xf]
        %v1389 = vld [vmem:[#allocation2 + $0x14c] sm:$0xf]
        %v1390 = vld [vmem:[#allocation2 + $0x150] sm:$0xf]
        %v1391 = vld [vmem:[#allocation2 + $0x154] sm:$0xf]
        %v1392 = vld [vmem:[#allocation2 + $0x158] sm:$0xf]
        %v1393 = vld [vmem:[#allocation2 + $0x15c] sm:$0xf]
        %v1394 = vld [vmem:[#allocation2 + $0x160] sm:$0xf]
        %v1395 = vld [vmem:[#allocation2 + $0x164] sm:$0xf]
        %v1396 = vld [vmem:[#allocation2 + $0x168] sm:$0xf]
        %v1397 = vld [vmem:[#allocation2 + $0x16c] sm:$0xf]
        %v1398 = vld [vmem:[#allocation2 + $0x170] sm:$0xf]
        %v1399 = vld [vmem:[#allocation2 + $0x174] sm:$0xf]
        %v1400 = vld [vmem:[#allocation2 + $0x178] sm:$0xf]
        %v1401 = vld [vmem:[#allocation2 + $0x17c] sm:$0xf]
        %v1402 = vlaneseq
        %v1403 = vshrl.u32 %v1402, 7
        %v1404 = vsub.s32 0, %v1403
        %v1405 = vrot.slane %v1322, %v1404
        %v1422 = vunpack.c.l.b16 %v1386
        %v1423 = vunpack.c.l.b16 %v1387
        %v1424 = vunpack.c.l.b16 %v1388
        %v1425 = vunpack.c.l.b16 %v1389
        %v1426 = vunpack.c.l.b16 %v1390
        %v1427 = vunpack.c.l.b16 %v1391
        %v1428 = vunpack.c.l.b16 %v1392
        %v1429 = vunpack.c.l.b16 %v1393
        %v1430 = vunpack.c.l.b16 %v1394
        %v1431 = vunpack.c.l.b16 %v1395
        %v1432 = vunpack.c.l.b16 %v1396
        %v1433 = vunpack.c.l.b16 %v1397
        %v1434 = vunpack.c.l.b16 %v1398
        %v1435 = vunpack.c.l.b16 %v1399
        %v1436 = vunpack.c.l.b16 %v1400
        %v1437 = vunpack.c.l.b16 %v1401
        %v1438 = vpack.c.b16 %v1423, %v1422
        %v1439 = vpack.c.b16 %v1425, %v1424
        %v1440 = vpack.c.b16 %v1427, %v1426
        %v1441 = vpack.c.b16 %v1429, %v1428
        %v1442 = vpack.c.b16 %v1431, %v1430
        %v1443 = vpack.c.b16 %v1433, %v1432
        %v1444 = vpack.c.b16 %v1435, %v1434
        %v1445 = vpack.c.b16 %v1437, %v1436
        %1454 = vmatprep.subr.bf16.mxu0 0
        %1455 = vmatpush1.bf16.msra.mxu0 %v1445
        %1456 = vmatprep.subr.bf16.mxu0 0
        %1457 = vmatpush1.bf16.msra.mxu0 %v1444
        %1458 = vmatprep.subr.bf16.mxu0 0
        %1459 = vmatpush1.bf16.msra.mxu0 %v1443
        %1460 = vmatprep.subr.bf16.mxu0 0
        %1461 = vmatpush1.bf16.msra.mxu0 %v1442
        %1462 = vmatprep.subr.bf16.mxu0 0
        %1463 = vmatpush1.bf16.msra.mxu0 %v1441
        %1464 = vmatprep.subr.bf16.mxu0 0
        %1465 = vmatpush1.bf16.msra.mxu0 %v1440
        %1466 = vmatprep.subr.bf16.mxu0 0
        %1467 = vmatpush1.bf16.msra.mxu0 %v1439
        %1468 = vmatprep.subr.bf16.mxu0 0
        %1469 = vmatpush1.bf16.msra.mxu0 %v1438
        %1470 = vmatprep.subr.bf16.mxu0 0
        %1471 = vmatpush2.bf16.msra.mxu0 0
        %1472 = vmatprep.subr.bf16.mxu0 0
        %1473 = vmatpush2.bf16.msra.mxu0 0
        %1474 = vmatprep.subr.bf16.mxu0 0
        %1475 = vmatpush2.bf16.msra.mxu0 0
        %1476 = vmatprep.subr.bf16.mxu0 0
        %1477 = vmatpush2.bf16.msra.mxu0 0
        %1478 = vmatprep.subr.bf16.mxu0 0
        %1479 = vmatpush2.bf16.msra.mxu0 0
        %1480 = vmatprep.subr.bf16.mxu0 0
        %1481 = vmatpush2.bf16.msra.mxu0 0
        %1482 = vmatprep.subr.bf16.mxu0 0
        %1483 = vmatpush2.bf16.msra.mxu0 0
        %1484 = vmatprep.subr.bf16.mxu0 0
        %1485 = vmatpush2.bf16.msra.mxu0 0
        %1486 = vmatprep.mubr.bf16.mxu0 0
        %1487 = vmatmul.mubr.bf16.gmra.mxu0 %v1385
        %v1488 = vpop.f32.mrf.mxu0
        %v1489 = vadd.f32 %v1405, %v1488
        %v1490 = vpop.f32.mrf.mxu0
        %v1491 = vpop.f32.mrf.mxu0
        %v1492 = vadd.f32 %v1405, %v1491
        %v1493 = vpop.f32.mrf.mxu0
        %1494 = vdwg.mxu0
        %v1495 = vld [vmem:[#allocation5 + $0x11] sm:$0x1]
        %v1496 = vld [vmem:[#allocation5 + $0x12] sm:$0x1]
        %v1497 = vadd.f32 %v1489, %v1492
        %v1498 = vrot.slane %v1497, 4
        %v1499 = vadd.f32 %v1497, %v1498
        %v1500 = vrot.slane %v1499, 2
        %v1501 = vadd.f32 %v1499, %v1500
        %v1502 = vrot.slane %v1501, 1
        %v1503 = vadd.f32 %v1501, %v1502
        %v1504 = vmul.f32 %v1503, %v567
        %v1505 = vsub.f32 %v1489, %v1504
        %v1506 = vsub.f32 %v1492, %v1504
        %v1507 = vmul.f32 %v1505, %v1505
        %v1508 = vmul.f32 %v1506, %v1506
        %v1509 = vadd.f32 %v1507, %v1508
        %v1510 = vrot.slane %v1509, 4
        %v1511 = vadd.f32 %v1509, %v1510
        %v1512 = vrot.slane %v1511, 2
        %v1513 = vadd.f32 %v1511, %v1512
        %v1514 = vrot.slane %v1513, 1
        %v1515 = vadd.f32 %v1513, %v1514
        %v1516 = vmul.f32 %v1515, %v567
        %v1517 = vlaneseq
        %v1518 = vshrl.u32 %v1517, 7
        %v1519 = vsub.s32 0, %v1518
        %v1520 = vrot.slane %v1495, %v1519
        %v1521 = vmul.f32 %v1520, %v1505
        %v1522 = vmul.f32 %v1520, %v1506
        %v1523 = vadd.f32 %v1516, 1e-05
        %v1524 = vrsqrt.pop %v1523
        %v1525 = vmul.f32 %v1521, %v1524
        %v1526 = vmul.f32 %v1522, %v1524
        %v1527 = vlaneseq
        %v1528 = vshrl.u32 %v1527, 7
        %v1529 = vsub.s32 0, %v1528
        %v1530 = vrot.slane %v1496, %v1529
        %v1531 = vadd.f32 %v1525, %v1530
        %v1532 = vadd.f32 %v1526, %v1530
        %v1533 = vmax.f32 %v1531, 0.0
        %v1534 = vmax.f32 %v1532, 0.0
        %v1535 = vld [vmem:[#allocation5 + $0x13] sm:$0x1]
        %v1536 = vpack.c.bf16 %v1534, %v1533
        %1537 = vmatprep.subr.bf16.mxu0 0
        %1538 = vmatpush1.bf16.msra.mxu0 0
        %1539 = vmatprep.subr.bf16.mxu0 0
        %1540 = vmatpush1.bf16.msra.mxu0 0
        %1541 = vmatprep.subr.bf16.mxu0 0
        %1542 = vmatpush1.bf16.msra.mxu0 0
        %1543 = vmatprep.subr.bf16.mxu0 0
        %1544 = vmatpush1.bf16.msra.mxu0 0
        %1545 = vmatprep.subr.bf16.mxu0 0
        %1546 = vmatpush1.bf16.msra.mxu0 0
        %1547 = vmatprep.subr.bf16.mxu0 0
        %1548 = vmatpush1.bf16.msra.mxu0 0
        %1549 = vmatprep.subr.bf16.mxu0 0
        %1550 = vmatpush1.bf16.msra.mxu0 0
        %1551 = vmatprep.subr.bf16.mxu0 0
        %1552 = vmatpush1.bf16.msra.mxu0 %v1536
        %1553 = vmatprep.subr.bf16.mxu0 0
        %1554 = vmatpush2.bf16.msra.mxu0 0
        %1555 = vmatprep.subr.bf16.mxu0 0
        %1556 = vmatpush2.bf16.msra.mxu0 0
        %1557 = vmatprep.subr.bf16.mxu0 0
        %1558 = vmatpush2.bf16.msra.mxu0 0
        %1559 = vmatprep.subr.bf16.mxu0 0
        %1560 = vmatpush2.bf16.msra.mxu0 0
        %1561 = vmatprep.subr.bf16.mxu0 0
        %1562 = vmatpush2.bf16.msra.mxu0 0
        %1563 = vmatprep.subr.bf16.mxu0 0
        %1564 = vmatpush2.bf16.msra.mxu0 0
        %1565 = vmatprep.subr.bf16.mxu0 0
        %1566 = vmatpush2.bf16.msra.mxu0 0
        %1567 = vmatprep.subr.bf16.mxu0 0
        %1568 = vmatpush2.bf16.msra.mxu0 0
        %1569 = vmatprep.mubr.bf16.mxu0 0
        %1570 = vmatmul.mubr.bf16.gmra.mxu0 %v382
        %v1571 = vpop.f32.mrf.mxu0
        %v1572 = vadd.f32 0.0, %v1571
        %v1573 = vpop.f32.mrf.mxu0
        %v1574 = vpop.f32.mrf.mxu0
        %v1575 = vadd.f32 0.0, %v1574
        %v1576 = vpop.f32.mrf.mxu0
        %1577 = vmatprep.mubr.bf16.mxu0 0
        %1578 = vmatmul.mubr.bf16.gmra.mxu0 %v385
        %v1579 = vpop.f32.mrf.mxu0
        %v1580 = vadd.f32 0.0, %v1579
        %v1581 = vpop.f32.mrf.mxu0
        %v1582 = vpop.f32.mrf.mxu0
        %v1583 = vadd.f32 0.0, %v1582
        %v1584 = vpop.f32.mrf.mxu0
        %1585 = vdwg.mxu0
        %1586 = vrot.lane.b32.xlu0 %v1572, 32
        %v1587 = vpop.permute.xlu0 %1586
        %1588 = vrot.lane.b32.xlu0 %v1575, 32
        %v1589 = vpop.permute.xlu0 %1588
        %v1590 = vadd.f32 %v1533, %v1587
        %v1591 = vadd.f32 %v1534, %v1589
        %1592 = vrot.lane.b32.xlu0 %v1580, 64
        %v1593 = vpop.permute.xlu0 %1592
        %1594 = vrot.lane.b32.xlu0 %v1583, 64
        %v1595 = vpop.permute.xlu0 %1594
        %v1596 = vadd.f32 %v1590, %v1593
        %v1597 = vadd.f32 %v1591, %v1595
        %v1598 = vpack.c.bf16 %v1597, %v1596
        %v1599 = vld [vmem:[#allocation2 + $0x180] sm:$0xf]
        %v1600 = vld [vmem:[#allocation2 + $0x184] sm:$0xf]
        %v1601 = vld [vmem:[#allocation2 + $0x188] sm:$0xf]
        %v1602 = vld [vmem:[#allocation2 + $0x18c] sm:$0xf]
        %v1603 = vld [vmem:[#allocation2 + $0x190] sm:$0xf]
        %v1604 = vld [vmem:[#allocation2 + $0x194] sm:$0xf]
        %v1605 = vld [vmem:[#allocation2 + $0x198] sm:$0xf]
        %v1606 = vld [vmem:[#allocation2 + $0x19c] sm:$0xf]
        %v1607 = vld [vmem:[#allocation2 + $0x1a0] sm:$0xf]
        %v1608 = vld [vmem:[#allocation2 + $0x1a4] sm:$0xf]
        %v1609 = vld [vmem:[#allocation2 + $0x1a8] sm:$0xf]
        %v1610 = vld [vmem:[#allocation2 + $0x1ac] sm:$0xf]
        %v1611 = vld [vmem:[#allocation2 + $0x1b0] sm:$0xf]
        %v1612 = vld [vmem:[#allocation2 + $0x1b4] sm:$0xf]
        %v1613 = vld [vmem:[#allocation2 + $0x1b8] sm:$0xf]
        %v1614 = vld [vmem:[#allocation2 + $0x1bc] sm:$0xf]
        %v1615 = vlaneseq
        %v1616 = vshrl.u32 %v1615, 7
        %v1617 = vsub.s32 0, %v1616
        %v1618 = vrot.slane %v1535, %v1617
        %v1635 = vunpack.c.l.b16 %v1599
        %v1636 = vunpack.c.l.b16 %v1600
        %v1637 = vunpack.c.l.b16 %v1601
        %v1638 = vunpack.c.l.b16 %v1602
        %v1639 = vunpack.c.l.b16 %v1603
        %v1640 = vunpack.c.l.b16 %v1604
        %v1641 = vunpack.c.l.b16 %v1605
        %v1642 = vunpack.c.l.b16 %v1606
        %v1643 = vunpack.c.l.b16 %v1607
        %v1644 = vunpack.c.l.b16 %v1608
        %v1645 = vunpack.c.l.b16 %v1609
        %v1646 = vunpack.c.l.b16 %v1610
        %v1647 = vunpack.c.l.b16 %v1611
        %v1648 = vunpack.c.l.b16 %v1612
        %v1649 = vunpack.c.l.b16 %v1613
        %v1650 = vunpack.c.l.b16 %v1614
        %v1651 = vpack.c.b16 %v1636, %v1635
        %v1652 = vpack.c.b16 %v1638, %v1637
        %v1653 = vpack.c.b16 %v1640, %v1639
        %v1654 = vpack.c.b16 %v1642, %v1641
        %v1655 = vpack.c.b16 %v1644, %v1643
        %v1656 = vpack.c.b16 %v1646, %v1645
        %v1657 = vpack.c.b16 %v1648, %v1647
        %v1658 = vpack.c.b16 %v1650, %v1649
        %1667 = vmatprep.subr.bf16.mxu0 0
        %1668 = vmatpush1.bf16.msra.mxu0 %v1658
        %1669 = vmatprep.subr.bf16.mxu0 0
        %1670 = vmatpush1.bf16.msra.mxu0 %v1657
        %1671 = vmatprep.subr.bf16.mxu0 0
        %1672 = vmatpush1.bf16.msra.mxu0 %v1656
        %1673 = vmatprep.subr.bf16.mxu0 0
        %1674 = vmatpush1.bf16.msra.mxu0 %v1655
        %1675 = vmatprep.subr.bf16.mxu0 0
        %1676 = vmatpush1.bf16.msra.mxu0 %v1654
        %1677 = vmatprep.subr.bf16.mxu0 0
        %1678 = vmatpush1.bf16.msra.mxu0 %v1653
        %1679 = vmatprep.subr.bf16.mxu0 0
        %1680 = vmatpush1.bf16.msra.mxu0 %v1652
        %1681 = vmatprep.subr.bf16.mxu0 0
        %1682 = vmatpush1.bf16.msra.mxu0 %v1651
        %1683 = vmatprep.subr.bf16.mxu0 0
        %1684 = vmatpush2.bf16.msra.mxu0 0
        %1685 = vmatprep.subr.bf16.mxu0 0
        %1686 = vmatpush2.bf16.msra.mxu0 0
        %1687 = vmatprep.subr.bf16.mxu0 0
        %1688 = vmatpush2.bf16.msra.mxu0 0
        %1689 = vmatprep.subr.bf16.mxu0 0
        %1690 = vmatpush2.bf16.msra.mxu0 0
        %1691 = vmatprep.subr.bf16.mxu0 0
        %1692 = vmatpush2.bf16.msra.mxu0 0
        %1693 = vmatprep.subr.bf16.mxu0 0
        %1694 = vmatpush2.bf16.msra.mxu0 0
        %1695 = vmatprep.subr.bf16.mxu0 0
        %1696 = vmatpush2.bf16.msra.mxu0 0
        %1697 = vmatprep.subr.bf16.mxu0 0
        %1698 = vmatpush2.bf16.msra.mxu0 0
        %1699 = vmatprep.mubr.bf16.mxu0 0
        %1700 = vmatmul.mubr.bf16.gmra.mxu0 %v1598
        %v1701 = vpop.f32.mrf.mxu0
        %v1702 = vadd.f32 %v1618, %v1701
        %v1703 = vpop.f32.mrf.mxu0
        %v1704 = vpop.f32.mrf.mxu0
        %v1705 = vadd.f32 %v1618, %v1704
        %v1706 = vpop.f32.mrf.mxu0
        %1707 = vdwg.mxu0
        %v1708 = vld [vmem:[#allocation5 + $0x14] sm:$0x1]
        %v1709 = vld [vmem:[#allocation5 + $0x15] sm:$0x1]
        %v1710 = vadd.f32 %v1702, %v1705
        %v1711 = vrot.slane %v1710, 4
        %v1712 = vadd.f32 %v1710, %v1711
        %v1713 = vrot.slane %v1712, 2
        %v1714 = vadd.f32 %v1712, %v1713
        %v1715 = vrot.slane %v1714, 1
        %v1716 = vadd.f32 %v1714, %v1715
        %v1717 = vmul.f32 %v1716, %v567
        %v1718 = vsub.f32 %v1702, %v1717
        %v1719 = vsub.f32 %v1705, %v1717
        %v1720 = vmul.f32 %v1718, %v1718
        %v1721 = vmul.f32 %v1719, %v1719
        %v1722 = vadd.f32 %v1720, %v1721
        %v1723 = vrot.slane %v1722, 4
        %v1724 = vadd.f32 %v1722, %v1723
        %v1725 = vrot.slane %v1724, 2
        %v1726 = vadd.f32 %v1724, %v1725
        %v1727 = vrot.slane %v1726, 1
        %v1728 = vadd.f32 %v1726, %v1727
        %v1729 = vmul.f32 %v1728, %v567
        %v1730 = vlaneseq
        %v1731 = vshrl.u32 %v1730, 7
        %v1732 = vsub.s32 0, %v1731
        %v1733 = vrot.slane %v1708, %v1732
        %v1734 = vmul.f32 %v1733, %v1718
        %v1735 = vmul.f32 %v1733, %v1719
        %v1736 = vadd.f32 %v1729, 1e-05
        %v1737 = vrsqrt.pop %v1736
        %v1738 = vmul.f32 %v1734, %v1737
        %v1739 = vmul.f32 %v1735, %v1737
        %v1740 = vlaneseq
        %v1741 = vshrl.u32 %v1740, 7
        %v1742 = vsub.s32 0, %v1741
        %v1743 = vrot.slane %v1709, %v1742
        %v1744 = vadd.f32 %v1738, %v1743
        %v1745 = vadd.f32 %v1739, %v1743
        %v1746 = vadd.f32 %v1744, %v1320
        %v1747 = vadd.f32 %v1745, %v1321
        %v1748 = vld [vmem:[#allocation5 + $0x16] sm:$0x1]
        %v1749 = vld [vmem:[#allocation5 + $0x17] sm:$0x1]
        %v1750 = vmul.f32 %v1746, %v257
        %v1751 = vmul.f32 %v1747, %v257
        %1752 = vadd.xlane.f32.xlu0 %v1750
        %v1753 = vpop.xlane.xlu0 %1752
        %1754 = vadd.xlane.f32.xlu0 %v1751
        %v1755 = vpop.xlane.xlu0 %1754
        %v1756 = vmul.f32 %v1753, 0.03125
        %v1757 = vmul.f32 %v1755, 0.03125
        %v1758 = vsub.f32 %v1746, %v1756
        %v1759 = vsub.f32 %v1747, %v1757
        %v1760 = vmul.f32 %v1758, %v257
        %v1761 = vmul.f32 %v1759, %v257
        %v1762 = vmul.f32 %v1760, %v1760
        %v1763 = vmul.f32 %v1761, %v1761
        %1764 = vadd.xlane.f32.xlu0 %v1762
        %v1765 = vpop.xlane.xlu0 %1764
        %1766 = vadd.xlane.f32.xlu0 %v1763
        %v1767 = vpop.xlane.xlu0 %1766
        %v1768 = vmul.f32 %v1765, 0.03125
        %v1769 = vmul.f32 %v1767, 0.03125
        %v1770 = vlaneseq
        %v1771 = vshrl.u32 %v1770, 7
        %v1772 = vsub.s32 0, %v1771
        %v1773 = vrot.slane %v1748, %v1772
        %v1774 = vmul.f32 %v1773, %v1758
        %v1775 = vmul.f32 %v1773, %v1759
        %v1776 = vadd.f32 %v1768, 1e-05
        %v1777 = vadd.f32 %v1769, 1e-05
        %v1778 = vrsqrt.pop %v1776
        %v1779 = vrsqrt.pop %v1777
        %v1780 = vmul.f32 %v1774, %v1778
        %v1781 = vmul.f32 %v1775, %v1779
        %v1782 = vlaneseq
        %v1783 = vshrl.u32 %v1782, 7
        %v1784 = vsub.s32 0, %v1783
        %v1785 = vrot.slane %v1749, %v1784
        %v1786 = vadd.f32 %v1780, %v1785
        %v1787 = vadd.f32 %v1781, %v1785
        %v1788 = vmax.f32 %v1786, 0.0
        %v1789 = vmax.f32 %v1787, 0.0
        %v1790 = vpack.c.bf16 %v1789, %v1788
        %v1791 = vld [vmem:[#allocation2 + $0x1c0] sm:$0xf]
        %v1792 = vld [vmem:[#allocation2 + $0x1c4] sm:$0xf]
        %v1793 = vld [vmem:[#allocation2 + $0x1c8] sm:$0xf]
        %v1794 = vld [vmem:[#allocation2 + $0x1cc] sm:$0xf]
        %v1795 = vld [vmem:[#allocation2 + $0x1d0] sm:$0xf]
        %v1796 = vld [vmem:[#allocation2 + $0x1d4] sm:$0xf]
        %v1797 = vld [vmem:[#allocation2 + $0x1d8] sm:$0xf]
        %v1798 = vld [vmem:[#allocation2 + $0x1dc] sm:$0xf]
        %v1799 = vld [vmem:[#allocation2 + $0x1e0] sm:$0xf]
        %v1800 = vld [vmem:[#allocation2 + $0x1e4] sm:$0xf]
        %v1801 = vld [vmem:[#allocation2 + $0x1e8] sm:$0xf]
        %v1802 = vld [vmem:[#allocation2 + $0x1ec] sm:$0xf]
        %v1803 = vld [vmem:[#allocation2 + $0x1f0] sm:$0xf]
        %v1804 = vld [vmem:[#allocation2 + $0x1f4] sm:$0xf]
        %v1805 = vld [vmem:[#allocation2 + $0x1f8] sm:$0xf]
        %v1806 = vld [vmem:[#allocation2 + $0x1fc] sm:$0xf]
        %v1807 = vld [vmem:[#allocation5 + $0x19] sm:$0x1]
        %v1808 = vlaneseq
        %v1809 = vshrl.u32 %v1808, 7
        %v1810 = vsub.s32 0, %v1809
        %v1811 = vrot.slane %v1807, %v1810
        %v1828 = vunpack.c.l.b16 %v1791
        %v1829 = vunpack.c.l.b16 %v1792
        %v1830 = vunpack.c.l.b16 %v1793
        %v1831 = vunpack.c.l.b16 %v1794
        %v1832 = vunpack.c.l.b16 %v1795
        %v1833 = vunpack.c.l.b16 %v1796
        %v1834 = vunpack.c.l.b16 %v1797
        %v1835 = vunpack.c.l.b16 %v1798
        %v1836 = vunpack.c.l.b16 %v1799
        %v1837 = vunpack.c.l.b16 %v1800
        %v1838 = vunpack.c.l.b16 %v1801
        %v1839 = vunpack.c.l.b16 %v1802
        %v1840 = vunpack.c.l.b16 %v1803
        %v1841 = vunpack.c.l.b16 %v1804
        %v1842 = vunpack.c.l.b16 %v1805
        %v1843 = vunpack.c.l.b16 %v1806
        %v1844 = vpack.c.b16 %v1829, %v1828
        %v1845 = vpack.c.b16 %v1831, %v1830
        %v1846 = vpack.c.b16 %v1833, %v1832
        %v1847 = vpack.c.b16 %v1835, %v1834
        %v1848 = vpack.c.b16 %v1837, %v1836
        %v1849 = vpack.c.b16 %v1839, %v1838
        %v1850 = vpack.c.b16 %v1841, %v1840
        %v1851 = vpack.c.b16 %v1843, %v1842
        %1860 = vmatprep.subr.bf16.mxu0 0
        %1861 = vmatpush1.bf16.msra.mxu0 %v1851
        %1862 = vmatprep.subr.bf16.mxu0 0
        %1863 = vmatpush1.bf16.msra.mxu0 %v1850
        %1864 = vmatprep.subr.bf16.mxu0 0
        %1865 = vmatpush1.bf16.msra.mxu0 %v1849
        %1866 = vmatprep.subr.bf16.mxu0 0
        %1867 = vmatpush1.bf16.msra.mxu0 %v1848
        %1868 = vmatprep.subr.bf16.mxu0 0
        %1869 = vmatpush1.bf16.msra.mxu0 %v1847
        %1870 = vmatprep.subr.bf16.mxu0 0
        %1871 = vmatpush1.bf16.msra.mxu0 %v1846
        %1872 = vmatprep.subr.bf16.mxu0 0
        %1873 = vmatpush1.bf16.msra.mxu0 %v1845
        %1874 = vmatprep.subr.bf16.mxu0 0
        %1875 = vmatpush1.bf16.msra.mxu0 %v1844
        %1876 = vmatprep.subr.bf16.mxu0 0
        %1877 = vmatpush2.bf16.msra.mxu0 0
        %1878 = vmatprep.subr.bf16.mxu0 0
        %1879 = vmatpush2.bf16.msra.mxu0 0
        %1880 = vmatprep.subr.bf16.mxu0 0
        %1881 = vmatpush2.bf16.msra.mxu0 0
        %1882 = vmatprep.subr.bf16.mxu0 0
        %1883 = vmatpush2.bf16.msra.mxu0 0
        %1884 = vmatprep.subr.bf16.mxu0 0
        %1885 = vmatpush2.bf16.msra.mxu0 0
        %1886 = vmatprep.subr.bf16.mxu0 0
        %1887 = vmatpush2.bf16.msra.mxu0 0
        %1888 = vmatprep.subr.bf16.mxu0 0
        %1889 = vmatpush2.bf16.msra.mxu0 0
        %1890 = vmatprep.subr.bf16.mxu0 0
        %1891 = vmatpush2.bf16.msra.mxu0 0
        %1892 = vmatprep.mubr.bf16.mxu0 0
        %1893 = vmatmul.mubr.bf16.gmra.mxu0 %v1790
        %v1894 = vpop.f32.mrf.mxu0
        %v1895 = vadd.f32 %v1811, %v1894
        %v1896 = vpop.f32.mrf.mxu0
        %v1897 = vpop.f32.mrf.mxu0
        %v1898 = vadd.f32 %v1811, %v1897
        %v1899 = vpop.f32.mrf.mxu0
        %1900 = vdwg.mxu0
        %1901 = vst [vmem:[%s235] sm:$0xff] %v1895
        %1902 = vst [vmem:[%s235 + $0x8] sm:$0xff] %v1898
        %s1903 = sand.u32 %s122, 1
        %s1904 = scalar_lea.sflag [#allocation4], %s1903
        %s1905 = sand.u32 %s122, 1
        %s1906 = smul.addr %s1905, 16
        %s1907 = scalar_lea.vmem [#allocation7], %s1906
        // Predicated region
        $region45: #{hierarchical_graph_module.1} parent=35 // pred_check
          %p1908 = pneg %p132
        $region46: #{hierarchical_graph_module.1} parent=35 // pred_check_branch
          %1910 = sbr.rel (%p1908) target = $region48
        $region47: #{hierarchical_graph_module.1} parent=35 // pred_region
          %s1912 = ssub.s32 256, 256
          %1913 = vsyncadd %s1904, %s1912
          %s1914 = smul.addr %s20, 2
          %s1915 = smul.addr %s1914, 128
          %s1916 = scalar_lea.hbm %s4, %s1915
          %s1917 = sshll.u32 %s1907, 4
          %s1918 = int_to_ptr.vmem [resolvable:$true] %s1917
          %1923 = dma.vmem_to_hbm [thread:$0]  %s1918, 256, %s1916, %s1904, 128, 128, 8
        $region48: #{hierarchical_graph_module.1} parent=35 // pred_fallthru
          _
      $region36: #{hierarchical_graph_module.1} parent=5 // pred_fallthru
        _
      %p1924 = scmp.le.s32.totalorder 2, %s15
      // Predicated region
      $region49: #{hierarchical_graph_module.1} parent=5 // pred_check
        %p1925 = pneg %p1924
      $region50: #{hierarchical_graph_module.1} parent=5 // pred_check_branch
        %1927 = sbr.rel (%p1925) target = $region52
      $region51: #{hierarchical_graph_module.1} parent=5 // pred_region
        %s1928 = ssub.s32 %s15, 2
        // Predicated region
        $region53: #{hierarchical_graph_module.1} parent=51 // pred_check
          %p1929 = pneg %p138
        $region54: #{hierarchical_graph_module.1} parent=51 // pred_check_branch
          %1931 = sbr.rel (%p1929) target = $region56
        $region55: #{hierarchical_graph_module.1} parent=51 // pred_region
          %s1932 = sand.u32 %s123, 1
          %s1933 = scalar_lea.sflag [#allocation4], %s1932
          %s1934 = sand.u32 %s123, 1
          %s1935 = smul.addr %s1934, 16
          %s1936 = scalar_lea.vmem [#allocation7], %s1935
          %1937 = dma.done %s1933, 256
        $region56: #{hierarchical_graph_module.1} parent=51 // pred_fallthru
          _
      $region52: #{hierarchical_graph_module.1} parent=5 // pred_fallthru
        _
    $region6: #{hierarchical_graph_module.1} parent=1 // loop_footer
      %s19 = sadd.s32 1, %s15
    $region7: #{hierarchical_graph_module.1} parent=1 // loop_footer_branch
      %14 = sbr.rel target = $region3
    $region8: #{hierarchical_graph_module.1} parent=1 // loop_exit
      _
    %1938 = vsyncpa [#allocation3], 1
    %s1939 = scalar_lea.sflag [#allocation3], 1
    %1940 = vsyncpa %s1939, 1
    %1941 = vsyncpa [#allocation6], 1
    %1942 = vsyncpa [#allocation4], 1
    %s1943 = scalar_lea.sflag [#allocation4], 1
    %1944 = vsyncpa %s1943, 1

</llo_original>
